<compile_context>
chip_gen: v6e
topology: v6e:2x2x1
jax: 0.10.0
libtpu: 0.0.40
codegen_flags: <defaults>
</compile_context>

<pallas_src>
import functools
import math

import jax
import jax.numpy as jnp
import numpy as np
from jax import lax
from jax.experimental import pallas as pl
from jax.experimental.pallas import tpu as pltpu


# ------------------------------ fused kernel -------------------------------- #

def mha_fused_kernel(num_heads,
                     vl_ref,                     # scalar-prefetch: (B,) int32 in SMEM
                     q_in_ref, k_in_ref, v_in_ref,
                     wq_ref, wk_ref, wv_ref, wo_ref,
                     o_ref):
    """Fused multi-head attention forward for one batch element.

    q_in_ref: (1, Tq, Dq); k_in_ref: (1, Tk, Dk); v_in_ref: (1, Tk, Dv)
    wq_ref: (H, Dq), wk_ref: (H, Dk), wv_ref: (H, Dv), wo_ref: (H, H)
        (torch.nn.Linear layout; contracted on dim 1 -> no transpose needed)
    o_ref:  (1, Tq, H)
    """
    b = pl.program_id(0)
    contract = (((1,), (1,)), ((), ()))   # contract dim-1 of lhs with dim-1 of rhs

    xq = q_in_ref[0]                      # (Tq, Dq)
    xk = k_in_ref[0]                      # (Tk, Dk)
    xv = v_in_ref[0]                      # (Tk, Dv)

    # Projections: x @ W.T  (MXU, f32 accumulate)
    q = lax.dot_general(xq, wq_ref[...], contract,
                        preferred_element_type=jnp.float32)   # (Tq, H)
    k = lax.dot_general(xk, wk_ref[...], contract,
                        preferred_element_type=jnp.float32)   # (Tk, H)
    v = lax.dot_general(xv, wv_ref[...], contract,
                        preferred_element_type=jnp.float32)   # (Tk, H)

    Tq, H = q.shape
    Tk = k.shape[0]
    dh = H // num_heads

    # Fold 1/sqrt(d_head) into q once (instead of scaling every (Tq,Tk) score tile).
    q = q * jnp.float32(1.0 / math.sqrt(dh))

    # Mask: key positions >= valid_len get -1e6 (exact reference masked_softmax).
    vlen = vl_ref[b]
    col = lax.broadcasted_iota(jnp.int32, (Tq, Tk), 1)
    valid = col < vlen

    head_outs = []
    for h in range(num_heads):            # static, fully unrolled
        lo = h * dh
        qh = q[:, lo:lo + dh]             # (Tq, dh)
        kh = k[:, lo:lo + dh]             # (Tk, dh)
        vh = v[:, lo:lo + dh]             # (Tk, dh)

        s = lax.dot_general(qh, kh, contract,
                            preferred_element_type=jnp.float32)   # (Tq, Tk)
        s = jnp.where(valid, s, jnp.float32(-1000000.0))
        s = s - jnp.max(s, axis=-1, keepdims=True)
        p = jnp.exp(s)
        p = p * pl.reciprocal(jnp.sum(p, axis=-1, keepdims=True), approx=True)

        head_outs.append(jnp.dot(p, vh, preferred_element_type=jnp.float32))  # (Tq, dh)

    concat = jnp.concatenate(head_outs, axis=-1)                  # (Tq, H)
    out = lax.dot_general(concat, wo_ref[...], contract,
                          preferred_element_type=jnp.float32)     # (Tq, H)
    o_ref[0] = out.astype(o_ref.dtype)


def multi_head_attention(queries, keys, values, valid_lens, params, num_heads):
    """queries: (B,Tq,Dq), keys/values: (B,Tk,Dk/Dv), valid_lens: (B,) or None."""
    Wq, Wk, Wv, Wo = params["W_q"], params["W_k"], params["W_v"], params["W_o"]
    B, Tq, Dq = queries.shape
    _, Tk, Dk = keys.shape
    Dv = values.shape[2]
    H = Wq.shape[0]

    if valid_lens is None:
        vl = jnp.full((B,), Tk, dtype=jnp.int32)   # no masking == full length
    else:
        vl = valid_lens.astype(jnp.int32)

    grid_spec = pltpu.PrefetchScalarGridSpec(
        num_scalar_prefetch=1,
        grid=(B,),
        in_specs=[
            pl.BlockSpec((1, Tq, Dq), lambda b, vl_ref: (b, 0, 0)),
            pl.BlockSpec((1, Tk, Dk), lambda b, vl_ref: (b, 0, 0)),
            pl.BlockSpec((1, Tk, Dv), lambda b, vl_ref: (b, 0, 0)),
            pl.BlockSpec((H, Dq), lambda b, vl_ref: (0, 0)),
            pl.BlockSpec((H, Dk), lambda b, vl_ref: (0, 0)),
            pl.BlockSpec((H, Dv), lambda b, vl_ref: (0, 0)),
            pl.BlockSpec((H, H), lambda b, vl_ref: (0, 0)),
        ],
        out_specs=pl.BlockSpec((1, Tq, H), lambda b, vl_ref: (b, 0, 0)),
    )

    return pl.pallas_call(
        functools.partial(mha_fused_kernel, num_heads),
        out_shape=jax.ShapeDtypeStruct((B, Tq, H), queries.dtype),
        grid_spec=grid_spec,
        compiler_params=pltpu.CompilerParams(
            dimension_semantics=("parallel",)),   # batch axis independent (v7x 2-TC)
    )(vl, queries, keys, values, Wq, Wk, Wv, Wo)


# ------------------------------ pure-JAX ref --------------------------------- #

def _transpose_qkv(x, num_heads):
    B, T, H = x.shape
    x = x.reshape(B, T, num_heads, H // num_heads)
    return jnp.transpose(x, (0, 2, 1, 3)).reshape(B * num_heads, T, H // num_heads)


def _transpose_output(x, num_heads):
    BH, T, dh = x.shape
    x = x.reshape(BH // num_heads, num_heads, T, dh)
    return jnp.transpose(x, (0, 2, 1, 3)).reshape(BH // num_heads, T, num_heads * dh)


def ref_mha(queries, keys, values, valid_lens, params, num_heads):
    Wq, Wk, Wv, Wo = params["W_q"], params["W_k"], params["W_v"], params["W_o"]
    q = _transpose_qkv(queries @ Wq.T, num_heads)
    k = _transpose_qkv(keys @ Wk.T, num_heads)
    v = _transpose_qkv(values @ Wv.T, num_heads)
    dh = q.shape[-1]
    scores = jnp.einsum("bqd,bkd->bqk", q, k) / math.sqrt(dh)
    if valid_lens is not None:
        vl = jnp.repeat(valid_lens.astype(jnp.int32), num_heads, axis=0)
        mask = jnp.arange(k.shape[1])[None, None, :] < vl[:, None, None]
        scores = jnp.where(mask, scores, -1000000.0)
    w = jax.nn.softmax(scores, axis=-1)
    out = jnp.einsum("bqk,bkd->bqd", w, v)
    out = _transpose_output(out, num_heads)
    return out @ Wo.T


# ---------------------------------- main -------------------------------------- #

if __name__ == "__main__":
    B, Tq, Tk = 2, 8, 8
    query_size = key_size = value_size = 16
    num_hiddens, num_heads = 32, 4

    key = jax.random.PRNGKey(0)
    k_q, k_k, k_v, k_wq, k_wk, k_wv, k_wo = jax.random.split(key, 7)

    queries = jax.random.normal(k_q, (B, Tq, query_size), dtype=jnp.float32)
    keys = jax.random.normal(k_k, (B, Tk, key_size), dtype=jnp.float32)
    values = jax.random.normal(k_v, (B, Tk, value_size), dtype=jnp.float32)
    valid_lens = jnp.array([3, 6], dtype=jnp.int32)

    params = {
        "W_q": 0.1 * jax.random.normal(k_wq, (num_hiddens, query_size), dtype=jnp.float32),
        "W_k": 0.1 * jax.random.normal(k_wk, (num_hiddens, key_size), dtype=jnp.float32),
        "W_v": 0.1 * jax.random.normal(k_wv, (num_hiddens, value_size), dtype=jnp.float32),
        "W_o": 0.1 * jax.random.normal(k_wo, (num_hiddens, num_hiddens), dtype=jnp.float32),
    }

    out = multi_head_attention(queries, keys, values, valid_lens, params, num_heads)
    out = jax.block_until_ready(out)

    ref = ref_mha(queries, keys, values, valid_lens, params, num_heads)
    assert out.shape == (B, Tq, num_hiddens)
    # Tolerance loosened vs. 1e-4 because of pl.reciprocal(approx=True) in the softmax.
    np.testing.assert_allclose(np.asarray(out), np.asarray(ref), rtol=2e-3, atol=2e-3)

    print("KERNEL_OK")
</pallas_src>

<mosaic_0001>
module attributes {stable_mosaic.version = 11 : i64} {
  func.func @mha_fused_kernel(%arg0: i32, %arg1: memref<2xi32, #tpu.memory_space<smem>>, %arg2: memref<1x8x16xf32, #tpu.memory_space<vmem>>, %arg3: memref<1x8x16xf32, #tpu.memory_space<vmem>>, %arg4: memref<1x8x16xf32, #tpu.memory_space<vmem>>, %arg5: memref<32x16xf32, #tpu.memory_space<vmem>>, %arg6: memref<32x16xf32, #tpu.memory_space<vmem>>, %arg7: memref<32x16xf32, #tpu.memory_space<vmem>>, %arg8: memref<32x32xf32, #tpu.memory_space<vmem>>, %arg9: memref<1x8x32xf32, #tpu.memory_space<vmem>>) attributes {dimension_semantics = [#tpu.dimension_semantics<parallel>], iteration_bounds = array<i64: 2>, scalar_prefetch = 1 : i64, scratch_operands = 0 : i64, tpu.core_type = #tpu.core_type<tc>, window_params = [{transform_indices = @transform_0, window_bounds = array<i64: 1, 8, 16>}, {transform_indices = @transform_1, window_bounds = array<i64: 1, 8, 16>}, {transform_indices = @transform_2, window_bounds = array<i64: 1, 8, 16>}, {pipeline_mode = #tpu.pipeline_mode<synchronous>, transform_indices = @transform_3, window_bounds = array<i64: 32, 16>}, {pipeline_mode = #tpu.pipeline_mode<synchronous>, transform_indices = @transform_4, window_bounds = array<i64: 32, 16>}, {pipeline_mode = #tpu.pipeline_mode<synchronous>, transform_indices = @transform_5, window_bounds = array<i64: 32, 16>}, {pipeline_mode = #tpu.pipeline_mode<synchronous>, transform_indices = @transform_6, window_bounds = array<i64: 32, 32>}, {transform_indices = @transform_7, window_bounds = array<i64: 1, 8, 32>}]} {
    %c0 = arith.constant 0 : index
    %c0_0 = arith.constant 0 : index
    %c0_1 = arith.constant 0 : index
    %0 = vector.load %arg2[%c0, %c0_0, %c0_1] : memref<1x8x16xf32, #tpu.memory_space<vmem>>, vector<1x8x16xf32>
    %1 = vector.shape_cast %0 : vector<1x8x16xf32> to vector<8x16xf32>
    %c0_2 = arith.constant 0 : index
    %c0_3 = arith.constant 0 : index
    %c0_4 = arith.constant 0 : index
    %2 = vector.load %arg3[%c0_2, %c0_3, %c0_4] : memref<1x8x16xf32, #tpu.memory_space<vmem>>, vector<1x8x16xf32>
    %3 = vector.shape_cast %2 : vector<1x8x16xf32> to vector<8x16xf32>
    %c0_5 = arith.constant 0 : index
    %c0_6 = arith.constant 0 : index
    %c0_7 = arith.constant 0 : index
    %4 = vector.load %arg4[%c0_5, %c0_6, %c0_7] : memref<1x8x16xf32, #tpu.memory_space<vmem>>, vector<1x8x16xf32>
    %5 = vector.shape_cast %4 : vector<1x8x16xf32> to vector<8x16xf32>
    %c0_8 = arith.constant 0 : index
    %c0_9 = arith.constant 0 : index
    %6 = vector.load %arg5[%c0_8, %c0_9] : memref<32x16xf32, #tpu.memory_space<vmem>>, vector<32x16xf32>
    %cst = arith.constant dense<0.000000e+00> : vector<8x32xf32>
    %7 = tpu.matmul %1, %6, %cst {dimension_numbers = #tpu.dot_dimension_numbers<[1], [1], [0], [0], [0, 0, 1, 0], [], []>} : vector<8x16xf32>, vector<32x16xf32>, vector<8x32xf32> -> vector<8x32xf32>
    %c0_10 = arith.constant 0 : index
    %c0_11 = arith.constant 0 : index
    %8 = vector.load %arg6[%c0_10, %c0_11] : memref<32x16xf32, #tpu.memory_space<vmem>>, vector<32x16xf32>
    %cst_12 = arith.constant dense<0.000000e+00> : vector<8x32xf32>
    %9 = tpu.matmul %3, %8, %cst_12 {dimension_numbers = #tpu.dot_dimension_numbers<[1], [1], [0], [0], [0, 0, 1, 0], [], []>} : vector<8x16xf32>, vector<32x16xf32>, vector<8x32xf32> -> vector<8x32xf32>
    %c0_13 = arith.constant 0 : index
    %c0_14 = arith.constant 0 : index
    %10 = vector.load %arg7[%c0_13, %c0_14] : memref<32x16xf32, #tpu.memory_space<vmem>>, vector<32x16xf32>
    %cst_15 = arith.constant dense<0.000000e+00> : vector<8x32xf32>
    %11 = tpu.matmul %5, %10, %cst_15 {dimension_numbers = #tpu.dot_dimension_numbers<[1], [1], [0], [0], [0, 0, 1, 0], [], []>} : vector<8x16xf32>, vector<32x16xf32>, vector<8x32xf32> -> vector<8x32xf32>
    %cst_16 = arith.constant 0.353553385 : f32
    %12 = vector.broadcast %cst_16 : f32 to vector<8x32xf32>
    %13 = arith.mulf %7, %12 : vector<8x32xf32>
    %14 = arith.index_cast %arg0 : i32 to index
    %15 = memref.load %arg1[%14] : memref<2xi32, #tpu.memory_space<smem>>
    %16 = tpu.iota {dimensions = array<i32: 1>} : vector<8x8xi32>
    %17 = vector.broadcast %15 : i32 to vector<8x8xi32>
    %18 = arith.cmpi slt, %16, %17 : vector<8x8xi32>
    %19 = vector.extract_strided_slice %13 {offsets = [0, 0], sizes = [8, 8], strides = [1, 1]} : vector<8x32xf32> to vector<8x8xf32>
    %20 = vector.extract_strided_slice %9 {offsets = [0, 0], sizes = [8, 8], strides = [1, 1]} : vector<8x32xf32> to vector<8x8xf32>
    %21 = vector.extract_strided_slice %11 {offsets = [0, 0], sizes = [8, 8], strides = [1, 1]} : vector<8x32xf32> to vector<8x8xf32>
    %cst_17 = arith.constant dense<0.000000e+00> : vector<8x8xf32>
    %22 = tpu.matmul %19, %20, %cst_17 {dimension_numbers = #tpu.dot_dimension_numbers<[1], [1], [0], [0], [0, 0, 1, 0], [], []>} : vector<8x8xf32>, vector<8x8xf32>, vector<8x8xf32> -> vector<8x8xf32>
    %cst_18 = arith.constant -1.000000e+06 : f32
    %23 = vector.broadcast %cst_18 : f32 to vector<8x8xf32>
    %24 = arith.select %18, %22, %23 : vector<8x8xi1>, vector<8x8xf32>
    %cst_19 = arith.constant dense<0xFF800000> : vector<8xf32>
    %25 = vector.multi_reduction <maximumf>, %24, %cst_19 [1] : vector<8x8xf32> to vector<8xf32>
    %26 = vector.shape_cast %25 : vector<8xf32> to vector<8x1xf32>
    %27 = vector.broadcast %26 : vector<8x1xf32> to vector<8x8xf32>
    %28 = arith.subf %24, %27 : vector<8x8xf32>
    %29 = math.exp %28 : vector<8x8xf32>
    %cst_20 = arith.constant dense<0.000000e+00> : vector<8xf32>
    %30 = vector.multi_reduction <add>, %29, %cst_20 [1] : vector<8x8xf32> to vector<8xf32>
    %31 = vector.shape_cast %30 : vector<8xf32> to vector<8x1xf32>
    %32 = tpu.reciprocal %31 {approx = true} : vector<8x1xf32> -> vector<8x1xf32>
    %33 = vector.broadcast %32 : vector<8x1xf32> to vector<8x8xf32>
    %34 = arith.mulf %29, %33 : vector<8x8xf32>
    %cst_21 = arith.constant dense<0.000000e+00> : vector<8x8xf32>
    %35 = tpu.matmul %34, %21, %cst_21 {dimension_numbers = #tpu.dot_dimension_numbers<[1], [0], [0], [1], [0, 0, 1, 1], [], []>} : vector<8x8xf32>, vector<8x8xf32>, vector<8x8xf32> -> vector<8x8xf32>
    %36 = vector.extract_strided_slice %13 {offsets = [0, 8], sizes = [8, 8], strides = [1, 1]} : vector<8x32xf32> to vector<8x8xf32>
    %37 = vector.extract_strided_slice %9 {offsets = [0, 8], sizes = [8, 8], strides = [1, 1]} : vector<8x32xf32> to vector<8x8xf32>
    %38 = vector.extract_strided_slice %11 {offsets = [0, 8], sizes = [8, 8], strides = [1, 1]} : vector<8x32xf32> to vector<8x8xf32>
    %cst_22 = arith.constant dense<0.000000e+00> : vector<8x8xf32>
    %39 = tpu.matmul %36, %37, %cst_22 {dimension_numbers = #tpu.dot_dimension_numbers<[1], [1], [0], [0], [0, 0, 1, 0], [], []>} : vector<8x8xf32>, vector<8x8xf32>, vector<8x8xf32> -> vector<8x8xf32>
    %cst_23 = arith.constant -1.000000e+06 : f32
    %40 = vector.broadcast %cst_23 : f32 to vector<8x8xf32>
    %41 = arith.select %18, %39, %40 : vector<8x8xi1>, vector<8x8xf32>
    %cst_24 = arith.constant dense<0xFF800000> : vector<8xf32>
    %42 = vector.multi_reduction <maximumf>, %41, %cst_24 [1] : vector<8x8xf32> to vector<8xf32>
    %43 = vector.shape_cast %42 : vector<8xf32> to vector<8x1xf32>
    %44 = vector.broadcast %43 : vector<8x1xf32> to vector<8x8xf32>
    %45 = arith.subf %41, %44 : vector<8x8xf32>
    %46 = math.exp %45 : vector<8x8xf32>
    %cst_25 = arith.constant dense<0.000000e+00> : vector<8xf32>
    %47 = vector.multi_reduction <add>, %46, %cst_25 [1] : vector<8x8xf32> to vector<8xf32>
    %48 = vector.shape_cast %47 : vector<8xf32> to vector<8x1xf32>
    %49 = tpu.reciprocal %48 {approx = true} : vector<8x1xf32> -> vector<8x1xf32>
    %50 = vector.broadcast %49 : vector<8x1xf32> to vector<8x8xf32>
    %51 = arith.mulf %46, %50 : vector<8x8xf32>
    %cst_26 = arith.constant dense<0.000000e+00> : vector<8x8xf32>
    %52 = tpu.matmul %51, %38, %cst_26 {dimension_numbers = #tpu.dot_dimension_numbers<[1], [0], [0], [1], [0, 0, 1, 1], [], []>} : vector<8x8xf32>, vector<8x8xf32>, vector<8x8xf32> -> vector<8x8xf32>
    %53 = vector.extract_strided_slice %13 {offsets = [0, 16], sizes = [8, 8], strides = [1, 1]} : vector<8x32xf32> to vector<8x8xf32>
    %54 = vector.extract_strided_slice %9 {offsets = [0, 16], sizes = [8, 8], strides = [1, 1]} : vector<8x32xf32> to vector<8x8xf32>
    %55 = vector.extract_strided_slice %11 {offsets = [0, 16], sizes = [8, 8], strides = [1, 1]} : vector<8x32xf32> to vector<8x8xf32>
    %cst_27 = arith.constant dense<0.000000e+00> : vector<8x8xf32>
    %56 = tpu.matmul %53, %54, %cst_27 {dimension_numbers = #tpu.dot_dimension_numbers<[1], [1], [0], [0], [0, 0, 1, 0], [], []>} : vector<8x8xf32>, vector<8x8xf32>, vector<8x8xf32> -> vector<8x8xf32>
    %cst_28 = arith.constant -1.000000e+06 : f32
    %57 = vector.broadcast %cst_28 : f32 to vector<8x8xf32>
    %58 = arith.select %18, %56, %57 : vector<8x8xi1>, vector<8x8xf32>
    %cst_29 = arith.constant dense<0xFF800000> : vector<8xf32>
    %59 = vector.multi_reduction <maximumf>, %58, %cst_29 [1] : vector<8x8xf32> to vector<8xf32>
    %60 = vector.shape_cast %59 : vector<8xf32> to vector<8x1xf32>
    %61 = vector.broadcast %60 : vector<8x1xf32> to vector<8x8xf32>
    %62 = arith.subf %58, %61 : vector<8x8xf32>
    %63 = math.exp %62 : vector<8x8xf32>
    %cst_30 = arith.constant dense<0.000000e+00> : vector<8xf32>
    %64 = vector.multi_reduction <add>, %63, %cst_30 [1] : vector<8x8xf32> to vector<8xf32>
    %65 = vector.shape_cast %64 : vector<8xf32> to vector<8x1xf32>
    %66 = tpu.reciprocal %65 {approx = true} : vector<8x1xf32> -> vector<8x1xf32>
    %67 = vector.broadcast %66 : vector<8x1xf32> to vector<8x8xf32>
    %68 = arith.mulf %63, %67 : vector<8x8xf32>
    %cst_31 = arith.constant dense<0.000000e+00> : vector<8x8xf32>
    %69 = tpu.matmul %68, %55, %cst_31 {dimension_numbers = #tpu.dot_dimension_numbers<[1], [0], [0], [1], [0, 0, 1, 1], [], []>} : vector<8x8xf32>, vector<8x8xf32>, vector<8x8xf32> -> vector<8x8xf32>
    %70 = vector.extract_strided_slice %13 {offsets = [0, 24], sizes = [8, 8], strides = [1, 1]} : vector<8x32xf32> to vector<8x8xf32>
    %71 = vector.extract_strided_slice %9 {offsets = [0, 24], sizes = [8, 8], strides = [1, 1]} : vector<8x32xf32> to vector<8x8xf32>
    %72 = vector.extract_strided_slice %11 {offsets = [0, 24], sizes = [8, 8], strides = [1, 1]} : vector<8x32xf32> to vector<8x8xf32>
    %cst_32 = arith.constant dense<0.000000e+00> : vector<8x8xf32>
    %73 = tpu.matmul %70, %71, %cst_32 {dimension_numbers = #tpu.dot_dimension_numbers<[1], [1], [0], [0], [0, 0, 1, 0], [], []>} : vector<8x8xf32>, vector<8x8xf32>, vector<8x8xf32> -> vector<8x8xf32>
    %cst_33 = arith.constant -1.000000e+06 : f32
    %74 = vector.broadcast %cst_33 : f32 to vector<8x8xf32>
    %75 = arith.select %18, %73, %74 : vector<8x8xi1>, vector<8x8xf32>
    %cst_34 = arith.constant dense<0xFF800000> : vector<8xf32>
    %76 = vector.multi_reduction <maximumf>, %75, %cst_34 [1] : vector<8x8xf32> to vector<8xf32>
    %77 = vector.shape_cast %76 : vector<8xf32> to vector<8x1xf32>
    %78 = vector.broadcast %77 : vector<8x1xf32> to vector<8x8xf32>
    %79 = arith.subf %75, %78 : vector<8x8xf32>
    %80 = math.exp %79 : vector<8x8xf32>
    %cst_35 = arith.constant dense<0.000000e+00> : vector<8xf32>
    %81 = vector.multi_reduction <add>, %80, %cst_35 [1] : vector<8x8xf32> to vector<8xf32>
    %82 = vector.shape_cast %81 : vector<8xf32> to vector<8x1xf32>
    %83 = tpu.reciprocal %82 {approx = true} : vector<8x1xf32> -> vector<8x1xf32>
    %84 = vector.broadcast %83 : vector<8x1xf32> to vector<8x8xf32>
    %85 = arith.mulf %80, %84 : vector<8x8xf32>
    %cst_36 = arith.constant dense<0.000000e+00> : vector<8x8xf32>
    %86 = tpu.matmul %85, %72, %cst_36 {dimension_numbers = #tpu.dot_dimension_numbers<[1], [0], [0], [1], [0, 0, 1, 1], [], []>} : vector<8x8xf32>, vector<8x8xf32>, vector<8x8xf32> -> vector<8x8xf32>
    %87 = tpu.concatenate %35, %52, %69, %86 in 1 : vector<8x8xf32>, vector<8x8xf32>, vector<8x8xf32>, vector<8x8xf32> -> vector<8x32xf32>
    %c0_37 = arith.constant 0 : index
    %c0_38 = arith.constant 0 : index
    %88 = vector.load %arg8[%c0_37, %c0_38] : memref<32x32xf32, #tpu.memory_space<vmem>>, vector<32x32xf32>
    %cst_39 = arith.constant dense<0.000000e+00> : vector<8x32xf32>
    %89 = tpu.matmul %87, %88, %cst_39 {dimension_numbers = #tpu.dot_dimension_numbers<[1], [1], [0], [0], [0, 0, 1, 0], [], []>} : vector<8x32xf32>, vector<32x32xf32>, vector<8x32xf32> -> vector<8x32xf32>
    %c0_40 = arith.constant 0 : index
    %c0_41 = arith.constant 0 : index
    %c0_42 = arith.constant 0 : index
    %90 = vector.load %arg9[%c0_40, %c0_41, %c0_42] : memref<1x8x32xf32, #tpu.memory_space<vmem>>, vector<1x8x32xf32>
    %91 = vector.shape_cast %90 : vector<1x8x32xf32> to vector<8x32xf32>
    %92 = vector.shape_cast %89 : vector<8x32xf32> to vector<1x8x32xf32>
    tpu.vector_store %arg9[%c0_40, %c0_41, %c0_42], %92 {strides = array<i32>} : memref<1x8x32xf32, #tpu.memory_space<vmem>>, vector<1x8x32xf32>,
    return
  }
  func.func @transform_0(%arg0: i32, %arg1: memref<2xi32, #tpu.memory_space<smem>>) -> (i32, i32, i32) {
    %c0_i32 = arith.constant 0 : i32
    %c0_i32_0 = arith.constant 0 : i32
    %c0_i32_1 = arith.constant 0 : i32
    return %arg0, %c0_i32, %c0_i32_0 : i32, i32, i32
  }
  func.func @transform_1(%arg0: i32, %arg1: memref<2xi32, #tpu.memory_space<smem>>) -> (i32, i32, i32) {
    %c0_i32 = arith.constant 0 : i32
    %c0_i32_0 = arith.constant 0 : i32
    %c0_i32_1 = arith.constant 0 : i32
    return %arg0, %c0_i32, %c0_i32_0 : i32, i32, i32
  }
  func.func @transform_2(%arg0: i32, %arg1: memref<2xi32, #tpu.memory_space<smem>>) -> (i32, i32, i32) {
    %c0_i32 = arith.constant 0 : i32
    %c0_i32_0 = arith.constant 0 : i32
    %c0_i32_1 = arith.constant 0 : i32
    return %arg0, %c0_i32, %c0_i32_0 : i32, i32, i32
  }
  func.func @transform_3(%arg0: i32, %arg1: memref<2xi32, #tpu.memory_space<smem>>) -> (i32, i32) {
    %c0_i32 = arith.constant 0 : i32
    %c0_i32_0 = arith.constant 0 : i32
    %c0_i32_1 = arith.constant 0 : i32
    return %c0_i32, %c0_i32_0 : i32, i32
  }
  func.func @transform_4(%arg0: i32, %arg1: memref<2xi32, #tpu.memory_space<smem>>) -> (i32, i32) {
    %c0_i32 = arith.constant 0 : i32
    %c0_i32_0 = arith.constant 0 : i32
    %c0_i32_1 = arith.constant 0 : i32
    return %c0_i32, %c0_i32_0 : i32, i32
  }
  func.func @transform_5(%arg0: i32, %arg1: memref<2xi32, #tpu.memory_space<smem>>) -> (i32, i32) {
    %c0_i32 = arith.constant 0 : i32
    %c0_i32_0 = arith.constant 0 : i32
    %c0_i32_1 = arith.constant 0 : i32
    return %c0_i32, %c0_i32_0 : i32, i32
  }
  func.func @transform_6(%arg0: i32, %arg1: memref<2xi32, #tpu.memory_space<smem>>) -> (i32, i32) {
    %c0_i32 = arith.constant 0 : i32
    %c0_i32_0 = arith.constant 0 : i32
    %c0_i32_1 = arith.constant 0 : i32
    return %c0_i32, %c0_i32_0 : i32, i32
  }
  func.func @transform_7(%arg0: i32, %arg1: memref<2xi32, #tpu.memory_space<smem>>) -> (i32, i32, i32) {
    %c0_i32 = arith.constant 0 : i32
    %c0_i32_0 = arith.constant 0 : i32
    %c0_i32_1 = arith.constant 0 : i32
    return %arg0, %c0_i32, %c0_i32_0 : i32, i32, i32
  }
}

</mosaic_0001>

<llo_original>
// kernel: tpu_custom_call.1
$region0: #{tpu_custom_call.1}
  #allocation0 [shape = 'u32[]', space=smem, size = 0x4, offset = 0x4, fixed_abs, tag = 'smem constant byte address 0x4 - core index']
  #allocation1 [shape = 'u32[144,128]{1,0:T(1,128)}', space=vmem, size = 0x12000, scoped, tag = 'internal scratch']
  #allocation2 [shape = 's32[1]{0}', space=sflag, size = 0x4, scoped, tag = 'scoped memory for tpu_custom_call.1']
  #allocation3 [shape = 'u8[512]{0}', space=smem, size = 0x200, scoped, tag = 'prefetched SMEM operand 0']
  %s0 = inlined_call_operand.vmem [shape: s32[2], index: 0, kind: input, shape index: {}]
  %s1 = inlined_call_operand.vmem [shape: f32[2,8,16], index: 1, kind: input, shape index: {}]
  %s2 = inlined_call_operand.vmem [shape: f32[2,8,16], index: 2, kind: input, shape index: {}]
  %s3 = inlined_call_operand.vmem [shape: f32[2,8,16], index: 3, kind: input, shape index: {}]
  %s4 = inlined_call_operand.vmem [shape: f32[32,16], index: 4, kind: input, shape index: {}]
  %s5 = inlined_call_operand.vmem [shape: f32[32,16], index: 5, kind: input, shape index: {}]
  %s6 = inlined_call_operand.vmem [shape: f32[32,16], index: 6, kind: input, shape index: {}]
  %s7 = inlined_call_operand.vmem [shape: f32[32,32], index: 7, kind: input, shape index: {}]
  %s8 = inlined_call_operand.hbm [shape: f32[2,8,32], index: 8, kind: output, shape index: {}]
  %s9 = sld [smem:[#allocation0]]
  $region61: #{tpu_custom_call.1} parent=0
    _
  %s11 = ssub.s32 1, %s9
  %s12 = scalar_select 0, %s11, %s9
  %s13 = sshll.u32 %s0, 4
  %s14 = int_to_ptr.vmem [resolvable:$true] %s13
  %16 = dma.vmem_to_smem %s14, 16, [#allocation3], [#allocation2]
  %17 = dma.done [#allocation2], 16
  %18 = sfence
  $region1: #{tpu_custom_call.1} parent=0
    #allocation4 [shape = 'u8[8192]{0}', space=vmem, size = 0x2000, scoped, tag = 'output window, operand 0']
    #allocation5 [shape = 's32[2]{0}', space=sflag, size = 0x8, scoped, tag = 'scoped memory for tpu_custom_call.1']
    %19 = vsyncpa [#allocation5], 0
    %s20 = scalar_lea.sflag [#allocation5], 1
    %21 = vsyncpa %s20, 0
    loop: start=0, step=1, limit=4
    $region2: #{tpu_custom_call.1} parent=1 // loop_pre_header
      _
    $region3: #{tpu_custom_call.1} parent=1 // loop_header
      %s23 = sphi 0, %s27
      %p24 = scmp.ge.s32.totalorder %s23, 4
      %s33 = sphi 0, %s35
      %s36 = sphi 0, %s33
      %s37 = sphi 0, %s36
      %s53 = sphi 0, %s37
      %s59 = sphi 0, %s61
      %s62 = sphi 0, %s59
      %s63 = sphi 0, %s62
      %s79 = sphi 0, %s63
      %s85 = sphi 0, %s87
      %s88 = sphi 0, %s85
      %s89 = sphi 0, %s88
      %s105 = sphi 0, %s89
      %s109 = sphi 0, %s109
      %s111 = sphi 0, %s109
      %s112 = sphi 0, %s111
      %s126 = sphi 0, %s112
      %s130 = sphi 0, %s130
      %s132 = sphi 0, %s130
      %s133 = sphi 0, %s132
      %s147 = sphi 0, %s133
      %s151 = sphi 0, %s151
      %s153 = sphi 0, %s151
      %s154 = sphi 0, %s153
      %s168 = sphi 0, %s154
      %s172 = sphi 0, %s172
      %s174 = sphi 0, %s172
      %s175 = sphi 0, %s174
      %s189 = sphi 0, %s175
      %s195 = sphi 0, %s197
      %s198 = sphi 0, %s195
      %s199 = sphi 0, %s198
      %s215 = sphi 0, %s199
    $region4: #{tpu_custom_call.1} parent=1 // loop_header_branch
      %26 = sbr.rel (%p24) target = $region8
    $region5: #{tpu_custom_call.1} parent=1 // loop_body
      %s28 = ssub.s32 %s23, 1
      %s29 = ssub.s32 %s23, 2
      %s30 = sadd.s32 %s23, 1
      %s31 = ssub.s32 %s23, %s30
      %p32 = scmp.eq.s32.totalorder %s31, 0
      %s34 = sadd.s32 %s33, 1
      %s35 = scalar_select %p32, %s33, %s34
      %p38 = pneg %p32
      %p39 = scmp.eq.s32.totalorder %s23, 1
      %p40 = por %p38, %p39
      %p41 = scmp.ne.s32.totalorder %s33, %s36
      %p42 = scmp.eq.s32.totalorder %s23, 0
      %p43 = por %p41, %p42
      %p44 = scmp.ne.s32.totalorder %s33, %s36
      %p45 = scmp.eq.s32.totalorder %s28, 1
      %p46 = por %p44, %p45
      %p47 = scmp.ne.s32.totalorder %s36, %s37
      %p48 = scmp.eq.s32.totalorder %s28, 0
      %p49 = por %p47, %p48
      %p50 = scmp.ne.s32.totalorder %s36, %s37
      %p51 = scmp.eq.s32.totalorder %s29, 1
      %p52 = por %p50, %p51
      %p54 = scmp.ne.s32.totalorder %s37, %s53
      %p55 = scmp.eq.s32.totalorder %s29, 0
      %p56 = por %p54, %p55
      %s57 = ssub.s32 %s23, %s30
      %p58 = scmp.eq.s32.totalorder %s57, 0
      %s60 = sadd.s32 %s59, 1
      %s61 = scalar_select %p58, %s59, %s60
      %p64 = pneg %p58
      %p65 = scmp.eq.s32.totalorder %s23, 1
      %p66 = por %p64, %p65
      %p67 = scmp.ne.s32.totalorder %s59, %s62
      %p68 = scmp.eq.s32.totalorder %s23, 0
      %p69 = por %p67, %p68
      %p70 = scmp.ne.s32.totalorder %s59, %s62
      %p71 = scmp.eq.s32.totalorder %s28, 1
      %p72 = por %p70, %p71
      %p73 = scmp.ne.s32.totalorder %s62, %s63
      %p74 = scmp.eq.s32.totalorder %s28, 0
      %p75 = por %p73, %p74
      %p76 = scmp.ne.s32.totalorder %s62, %s63
      %p77 = scmp.eq.s32.totalorder %s29, 1
      %p78 = por %p76, %p77
      %p80 = scmp.ne.s32.totalorder %s63, %s79
      %p81 = scmp.eq.s32.totalorder %s29, 0
      %p82 = por %p80, %p81
      %s83 = ssub.s32 %s23, %s30
      %p84 = scmp.eq.s32.totalorder %s83, 0
      %s86 = sadd.s32 %s85, 1
      %s87 = scalar_select %p84, %s85, %s86
      %p90 = pneg %p84
      %p91 = scmp.eq.s32.totalorder %s23, 1
      %p92 = por %p90, %p91
      %p93 = scmp.ne.s32.totalorder %s85, %s88
      %p94 = scmp.eq.s32.totalorder %s23, 0
      %p95 = por %p93, %p94
      %p96 = scmp.ne.s32.totalorder %s85, %s88
      %p97 = scmp.eq.s32.totalorder %s28, 1
      %p98 = por %p96, %p97
      %p99 = scmp.ne.s32.totalorder %s88, %s89
      %p100 = scmp.eq.s32.totalorder %s28, 0
      %p101 = por %p99, %p100
      %p102 = scmp.ne.s32.totalorder %s88, %s89
      %p103 = scmp.eq.s32.totalorder %s29, 1
      %p104 = por %p102, %p103
      %p106 = scmp.ne.s32.totalorder %s89, %s105
      %p107 = scmp.eq.s32.totalorder %s29, 0
      %p108 = por %p106, %p107
      %s110 = sadd.s32 %s109, 1
      %p113 = scmp.eq.s32.totalorder %s23, 1
      %p114 = scmp.ne.s32.totalorder %s109, %s111
      %p115 = scmp.eq.s32.totalorder %s23, 0
      %p116 = por %p114, %p115
      %p117 = scmp.ne.s32.totalorder %s109, %s111
      %p118 = scmp.eq.s32.totalorder %s28, 1
      %p119 = por %p117, %p118
      %p120 = scmp.ne.s32.totalorder %s111, %s112
      %p121 = scmp.eq.s32.totalorder %s28, 0
      %p122 = por %p120, %p121
      %p123 = scmp.ne.s32.totalorder %s111, %s112
      %p124 = scmp.eq.s32.totalorder %s29, 1
      %p125 = por %p123, %p124
      %p127 = scmp.ne.s32.totalorder %s112, %s126
      %p128 = scmp.eq.s32.totalorder %s29, 0
      %p129 = por %p127, %p128
      %s131 = sadd.s32 %s130, 1
      %p134 = scmp.eq.s32.totalorder %s23, 1
      %p135 = scmp.ne.s32.totalorder %s130, %s132
      %p136 = scmp.eq.s32.totalorder %s23, 0
      %p137 = por %p135, %p136
      %p138 = scmp.ne.s32.totalorder %s130, %s132
      %p139 = scmp.eq.s32.totalorder %s28, 1
      %p140 = por %p138, %p139
      %p141 = scmp.ne.s32.totalorder %s132, %s133
      %p142 = scmp.eq.s32.totalorder %s28, 0
      %p143 = por %p141, %p142
      %p144 = scmp.ne.s32.totalorder %s132, %s133
      %p145 = scmp.eq.s32.totalorder %s29, 1
      %p146 = por %p144, %p145
      %p148 = scmp.ne.s32.totalorder %s133, %s147
      %p149 = scmp.eq.s32.totalorder %s29, 0
      %p150 = por %p148, %p149
      %s152 = sadd.s32 %s151, 1
      %p155 = scmp.eq.s32.totalorder %s23, 1
      %p156 = scmp.ne.s32.totalorder %s151, %s153
      %p157 = scmp.eq.s32.totalorder %s23, 0
      %p158 = por %p156, %p157
      %p159 = scmp.ne.s32.totalorder %s151, %s153
      %p160 = scmp.eq.s32.totalorder %s28, 1
      %p161 = por %p159, %p160
      %p162 = scmp.ne.s32.totalorder %s153, %s154
      %p163 = scmp.eq.s32.totalorder %s28, 0
      %p164 = por %p162, %p163
      %p165 = scmp.ne.s32.totalorder %s153, %s154
      %p166 = scmp.eq.s32.totalorder %s29, 1
      %p167 = por %p165, %p166
      %p169 = scmp.ne.s32.totalorder %s154, %s168
      %p170 = scmp.eq.s32.totalorder %s29, 0
      %p171 = por %p169, %p170
      %s173 = sadd.s32 %s172, 1
      %p176 = scmp.eq.s32.totalorder %s23, 1
      %p177 = scmp.ne.s32.totalorder %s172, %s174
      %p178 = scmp.eq.s32.totalorder %s23, 0
      %p179 = por %p177, %p178
      %p180 = scmp.ne.s32.totalorder %s172, %s174
      %p181 = scmp.eq.s32.totalorder %s28, 1
      %p182 = por %p180, %p181
      %p183 = scmp.ne.s32.totalorder %s174, %s175
      %p184 = scmp.eq.s32.totalorder %s28, 0
      %p185 = por %p183, %p184
      %p186 = scmp.ne.s32.totalorder %s174, %s175
      %p187 = scmp.eq.s32.totalorder %s29, 1
      %p188 = por %p186, %p187
      %p190 = scmp.ne.s32.totalorder %s175, %s189
      %p191 = scmp.eq.s32.totalorder %s29, 0
      %p192 = por %p190, %p191
      %s193 = ssub.s32 %s23, %s30
      %p194 = scmp.eq.s32.totalorder %s193, 0
      %s196 = sadd.s32 %s195, 1
      %s197 = scalar_select %p194, %s195, %s196
      %p200 = pneg %p194
      %p201 = scmp.eq.s32.totalorder %s23, 1
      %p202 = por %p200, %p201
      %p203 = scmp.ne.s32.totalorder %s195, %s198
      %p204 = scmp.eq.s32.totalorder %s23, 0
      %p205 = por %p203, %p204
      %p206 = scmp.ne.s32.totalorder %s195, %s198
      %p207 = scmp.eq.s32.totalorder %s28, 1
      %p208 = por %p206, %p207
      %p209 = scmp.ne.s32.totalorder %s198, %s199
      %p210 = scmp.eq.s32.totalorder %s28, 0
      %p211 = por %p209, %p210
      %p212 = scmp.ne.s32.totalorder %s198, %s199
      %p213 = scmp.eq.s32.totalorder %s29, 1
      %p214 = por %p212, %p213
      %p216 = scmp.ne.s32.totalorder %s199, %s215
      %p217 = scmp.eq.s32.totalorder %s29, 0
      %p218 = por %p216, %p217
      %p219 = scmp.le.s32.totalorder 1, %s23
      %p220 = scmp.lt.s32.totalorder %s23, 3
      %p221 = pnand %p219, %p220
      %p222 = pneg %p221
      // Predicated region
      $region9: #{tpu_custom_call.1} parent=5 // pred_check
        _
      $region10: #{tpu_custom_call.1} parent=5 // pred_check_branch
        %224 = sbr.rel (%p221) target = $region12
      $region11: #{tpu_custom_call.1} parent=5 // pred_region
        %s225 = ssub.s32 %s23, 1
        // Predicated region
        $region13: #{tpu_custom_call.1} parent=11 // pred_check
          %p226 = pneg %p122
        $region14: #{tpu_custom_call.1} parent=11 // pred_check_branch
          %228 = sbr.rel (%p226) target = $region16
        $region15: #{tpu_custom_call.1} parent=11 // pred_region
          _
        $region16: #{tpu_custom_call.1} parent=11 // pred_fallthru
          _
        // Predicated region
        $region17: #{tpu_custom_call.1} parent=11 // pred_check
          %p229 = pneg %p143
        $region18: #{tpu_custom_call.1} parent=11 // pred_check_branch
          %231 = sbr.rel (%p229) target = $region20
        $region19: #{tpu_custom_call.1} parent=11 // pred_region
          _
        $region20: #{tpu_custom_call.1} parent=11 // pred_fallthru
          _
        // Predicated region
        $region21: #{tpu_custom_call.1} parent=11 // pred_check
          %p232 = pneg %p164
        $region22: #{tpu_custom_call.1} parent=11 // pred_check_branch
          %234 = sbr.rel (%p232) target = $region24
        $region23: #{tpu_custom_call.1} parent=11 // pred_region
          _
        $region24: #{tpu_custom_call.1} parent=11 // pred_fallthru
          _
        // Predicated region
        $region25: #{tpu_custom_call.1} parent=11 // pred_check
          %p235 = pneg %p185
        $region26: #{tpu_custom_call.1} parent=11 // pred_check_branch
          %237 = sbr.rel (%p235) target = $region28
        $region27: #{tpu_custom_call.1} parent=11 // pred_region
          _
        $region28: #{tpu_custom_call.1} parent=11 // pred_fallthru
          _
      $region12: #{tpu_custom_call.1} parent=5 // pred_fallthru
        _
      %p238 = scmp.lt.s32.totalorder %s23, 2
      // Predicated region
      $region29: #{tpu_custom_call.1} parent=5 // pred_check
        %p239 = pneg %p238
      $region30: #{tpu_custom_call.1} parent=5 // pred_check_branch
        %241 = sbr.rel (%p239) target = $region32
      $region31: #{tpu_custom_call.1} parent=5 // pred_region
        // Predicated region
        $region33: #{tpu_custom_call.1} parent=31 // pred_check
          %p242 = pneg %p43
        $region34: #{tpu_custom_call.1} parent=31 // pred_check_branch
          %244 = sbr.rel (%p242) target = $region36
        $region35: #{tpu_custom_call.1} parent=31 // pred_region
          %p245 = scmp.lt.s32.totalorder %s23, 1
          %s246 = scalar_select %p245, %s23, 1
          %s247 = smul.addr %s246, 8
          %s248 = scalar_lea.vmem %s1, %s247
        $region36: #{tpu_custom_call.1} parent=31 // pred_fallthru
          _
        // Predicated region
        $region37: #{tpu_custom_call.1} parent=31 // pred_check
          %p249 = pneg %p69
        $region38: #{tpu_custom_call.1} parent=31 // pred_check_branch
          %251 = sbr.rel (%p249) target = $region40
        $region39: #{tpu_custom_call.1} parent=31 // pred_region
          %p252 = scmp.lt.s32.totalorder %s23, 1
          %s253 = scalar_select %p252, %s23, 1
          %s254 = smul.addr %s253, 8
          %s255 = scalar_lea.vmem %s2, %s254
        $region40: #{tpu_custom_call.1} parent=31 // pred_fallthru
          _
        // Predicated region
        $region41: #{tpu_custom_call.1} parent=31 // pred_check
          %p256 = pneg %p95
        $region42: #{tpu_custom_call.1} parent=31 // pred_check_branch
          %258 = sbr.rel (%p256) target = $region44
        $region43: #{tpu_custom_call.1} parent=31 // pred_region
          %p259 = scmp.lt.s32.totalorder %s23, 1
          %s260 = scalar_select %p259, %s23, 1
          %s261 = smul.addr %s260, 8
          %s262 = scalar_lea.vmem %s3, %s261
        $region44: #{tpu_custom_call.1} parent=31 // pred_fallthru
          _
      $region32: #{tpu_custom_call.1} parent=5 // pred_fallthru
        _
      %p263 = scmp.le.s32.totalorder 1, %s23
      %p264 = scmp.lt.s32.totalorder %s23, 3
      %p265 = pnand %p263, %p264
      %p266 = pneg %p265
      // Predicated region
      $region45: #{tpu_custom_call.1} parent=5 // pred_check
        _
      $region46: #{tpu_custom_call.1} parent=5 // pred_check_branch
        %268 = sbr.rel (%p265) target = $region48
      $region47: #{tpu_custom_call.1} parent=5 // pred_region
        %s269 = ssub.s32 %s23, 1
        %p270 = scmp.lt.s32.totalorder %s28, 1
        %s271 = scalar_select %p270, %s28, 1
        %s272 = smul.addr %s271, 8
        %s273 = scalar_lea.vmem %s1, %s272
        %p274 = pneg %p49
        %p275 = pneg %p46
        %p276 = scmp.lt.s32.totalorder %s28, 1
        %s277 = scalar_select %p276, %s28, 1
        %s278 = smul.addr %s277, 8
        %s279 = scalar_lea.vmem %s2, %s278
        %p280 = pneg %p75
        %p281 = pneg %p72
        %p282 = scmp.lt.s32.totalorder %s28, 1
        %s283 = scalar_select %p282, %s28, 1
        %s284 = smul.addr %s283, 8
        %s285 = scalar_lea.vmem %s3, %s284
        %p286 = pneg %p101
        %p287 = pneg %p98
        %p288 = pneg %p122
        %p289 = pneg %p119
        %p290 = pneg %p143
        %p291 = pneg %p140
        %p292 = pneg %p164
        %p293 = pneg %p161
        %p294 = pneg %p185
        %p295 = pneg %p182
        %p296 = pneg %p211
        %p297 = pneg %p208
        %s298 = sand.u32 %s198, 1
        %s299 = scalar_lea.sflag [#allocation5], %s298
        %s300 = sand.u32 %s198, 1
        %s301 = smul.addr %s300, 8
        %s302 = scalar_lea.vmem [#allocation4], %s301
        %p303 = scmp.lt.s32.totalorder %s28, 1
        %s304 = scalar_select %p303, %s28, 1
        %s305 = smul.addr %s304, 8
        %s306 = scalar_lea.vmem %s1, %s305
        %p307 = scmp.lt.s32.totalorder %s28, 1
        %s308 = scalar_select %p307, %s28, 1
        %s309 = smul.addr %s308, 8
        %s310 = scalar_lea.vmem %s2, %s309
        %p311 = scmp.lt.s32.totalorder %s28, 1
        %s312 = scalar_select %p311, %s28, 1
        %s313 = smul.addr %s312, 8
        %s314 = scalar_lea.vmem %s3, %s313
        %v315 = vld [vmem:[%s306] sm:$0xff]
        %v316 = vld [vmem:[%s310] sm:$0xff]
        %v317 = vld [vmem:[%s314] sm:$0xff]
        %v318 = vld [vmem:[%s4] sm:$0xff]
        %v319 = vld [vmem:[%s4 + $0x8] sm:$0xff]
        %v320 = vld [vmem:[%s4 + $0x10] sm:$0xff]
        %v321 = vld [vmem:[%s4 + $0x18] sm:$0xff]
        %vm322 = vcmask 130048
        %v324 = vsel %vm322, %v315, 0
        %v327 = vsel %vm322, %v318, 0
        %v330 = vsel %vm322, %v319, 0
        %v333 = vsel %vm322, %v320, 0
        %v336 = vsel %vm322, %v321, 0
        %338 = vmatprep.subr.mxu0 0.0
        %339 = vmatpush1.xpose.msra.mxu0 0.0
        %340 = vmatprep.subr.mxu0 0.0
        %341 = vmatpush1.xpose.msra.mxu0 0.0
        %342 = vmatprep.subr.mxu0 0.0
        %343 = vmatpush1.xpose.msra.mxu0 0.0
        %344 = vmatprep.subr.mxu0 0.0
        %345 = vmatpush1.xpose.msra.mxu0 0.0
        %346 = vmatprep.subr.mxu0 0.0
        %347 = vmatpush1.xpose.msra.mxu0 0.0
        %348 = vmatprep.subr.mxu0 0.0
        %349 = vmatpush1.xpose.msra.mxu0 0.0
        %350 = vmatprep.subr.mxu0 0.0
        %351 = vmatpush1.xpose.msra.mxu0 0.0
        %352 = vmatprep.subr.mxu0 0.0
        %353 = vmatpush1.xpose.msra.mxu0 0.0
        %354 = vmatprep.subr.mxu0 0.0
        %355 = vmatpush1.xpose.msra.mxu0 0.0
        %356 = vmatprep.subr.mxu0 0.0
        %357 = vmatpush1.xpose.msra.mxu0 0.0
        %358 = vmatprep.subr.mxu0 0.0
        %359 = vmatpush1.xpose.msra.mxu0 0.0
        %360 = vmatprep.subr.mxu0 0.0
        %361 = vmatpush1.xpose.msra.mxu0 0.0
        %362 = vmatprep.subr.mxu0 0.0
        %363 = vmatpush1.xpose.msra.mxu0 %v336
        %364 = vmatprep.subr.mxu0 0.0
        %365 = vmatpush1.xpose.msra.mxu0 %v333
        %366 = vmatprep.subr.mxu0 0.0
        %367 = vmatpush1.xpose.msra.mxu0 %v330
        %368 = vmatprep.subr.mxu0 0.0
        %369 = vmatpush1.xpose.msra.mxu0 %v327
        %370 = vmatprep.subr.mxu0 0.0
        %371 = vmatpush2.xpose.msra.mxu0 0.0
        %372 = vmatprep.subr.mxu0 0.0
        %373 = vmatpush2.xpose.msra.mxu0 0.0
        %374 = vmatprep.subr.mxu0 0.0
        %375 = vmatpush2.xpose.msra.mxu0 0.0
        %376 = vmatprep.subr.mxu0 0.0
        %377 = vmatpush2.xpose.msra.mxu0 0.0
        %378 = vmatprep.subr.mxu0 0.0
        %379 = vmatpush2.xpose.msra.mxu0 0.0
        %380 = vmatprep.subr.mxu0 0.0
        %381 = vmatpush2.xpose.msra.mxu0 0.0
        %382 = vmatprep.subr.mxu0 0.0
        %383 = vmatpush2.xpose.msra.mxu0 0.0
        %384 = vmatprep.subr.mxu0 0.0
        %385 = vmatpush2.xpose.msra.mxu0 0.0
        %386 = vmatprep.subr.mxu0 0.0
        %387 = vmatpush2.xpose.msra.mxu0 0.0
        %388 = vmatprep.subr.mxu0 0.0
        %389 = vmatpush2.xpose.msra.mxu0 0.0
        %390 = vmatprep.subr.mxu0 0.0
        %391 = vmatpush2.xpose.msra.mxu0 0.0
        %392 = vmatprep.subr.mxu0 0.0
        %393 = vmatpush2.xpose.msra.mxu0 0.0
        %394 = vmatprep.subr.mxu0 0.0
        %395 = vmatpush2.xpose.msra.mxu0 0.0
        %396 = vmatprep.subr.mxu0 0.0
        %397 = vmatpush2.xpose.msra.mxu0 0.0
        %398 = vmatprep.subr.mxu0 0.0
        %399 = vmatpush2.xpose.msra.mxu0 0.0
        %400 = vmatprep.subr.mxu0 0.0
        %401 = vmatpush2.xpose.msra.mxu0 0.0
        %402 = vmatprep.mubr.f32.mxu0 0.0
        %403 = vmatmul.mubr.f32.gmra.mxu0 %v324
        %v404 = vpop.f32.mrf.mxu0
        %v405 = vadd.f32 0.0, %v404
        %v406 = vpop.f32.mrf.mxu0
        %407 = vdwg.mxu0
        %v408 = vld [vmem:[%s5] sm:$0xff]
        %v409 = vld [vmem:[%s5 + $0x8] sm:$0xff]
        %v410 = vld [vmem:[%s5 + $0x10] sm:$0xff]
        %v411 = vld [vmem:[%s5 + $0x18] sm:$0xff]
        %v413 = vsel %vm322, %v316, 0
        %v416 = vsel %vm322, %v408, 0
        %v419 = vsel %vm322, %v409, 0
        %v422 = vsel %vm322, %v410, 0
        %v425 = vsel %vm322, %v411, 0
        %427 = vmatprep.subr.mxu0 0.0
        %428 = vmatpush1.xpose.msra.mxu0 0.0
        %429 = vmatprep.subr.mxu0 0.0
        %430 = vmatpush1.xpose.msra.mxu0 0.0
        %431 = vmatprep.subr.mxu0 0.0
        %432 = vmatpush1.xpose.msra.mxu0 0.0
        %433 = vmatprep.subr.mxu0 0.0
        %434 = vmatpush1.xpose.msra.mxu0 0.0
        %435 = vmatprep.subr.mxu0 0.0
        %436 = vmatpush1.xpose.msra.mxu0 0.0
        %437 = vmatprep.subr.mxu0 0.0
        %438 = vmatpush1.xpose.msra.mxu0 0.0
        %439 = vmatprep.subr.mxu0 0.0
        %440 = vmatpush1.xpose.msra.mxu0 0.0
        %441 = vmatprep.subr.mxu0 0.0
        %442 = vmatpush1.xpose.msra.mxu0 0.0
        %443 = vmatprep.subr.mxu0 0.0
        %444 = vmatpush1.xpose.msra.mxu0 0.0
        %445 = vmatprep.subr.mxu0 0.0
        %446 = vmatpush1.xpose.msra.mxu0 0.0
        %447 = vmatprep.subr.mxu0 0.0
        %448 = vmatpush1.xpose.msra.mxu0 0.0
        %449 = vmatprep.subr.mxu0 0.0
        %450 = vmatpush1.xpose.msra.mxu0 0.0
        %451 = vmatprep.subr.mxu0 0.0
        %452 = vmatpush1.xpose.msra.mxu0 %v425
        %453 = vmatprep.subr.mxu0 0.0
        %454 = vmatpush1.xpose.msra.mxu0 %v422
        %455 = vmatprep.subr.mxu0 0.0
        %456 = vmatpush1.xpose.msra.mxu0 %v419
        %457 = vmatprep.subr.mxu0 0.0
        %458 = vmatpush1.xpose.msra.mxu0 %v416
        %459 = vmatprep.subr.mxu0 0.0
        %460 = vmatpush2.xpose.msra.mxu0 0.0
        %461 = vmatprep.subr.mxu0 0.0
        %462 = vmatpush2.xpose.msra.mxu0 0.0
        %463 = vmatprep.subr.mxu0 0.0
        %464 = vmatpush2.xpose.msra.mxu0 0.0
        %465 = vmatprep.subr.mxu0 0.0
        %466 = vmatpush2.xpose.msra.mxu0 0.0
        %467 = vmatprep.subr.mxu0 0.0
        %468 = vmatpush2.xpose.msra.mxu0 0.0
        %469 = vmatprep.subr.mxu0 0.0
        %470 = vmatpush2.xpose.msra.mxu0 0.0
        %471 = vmatprep.subr.mxu0 0.0
        %472 = vmatpush2.xpose.msra.mxu0 0.0
        %473 = vmatprep.subr.mxu0 0.0
        %474 = vmatpush2.xpose.msra.mxu0 0.0
        %475 = vmatprep.subr.mxu0 0.0
        %476 = vmatpush2.xpose.msra.mxu0 0.0
        %477 = vmatprep.subr.mxu0 0.0
        %478 = vmatpush2.xpose.msra.mxu0 0.0
        %479 = vmatprep.subr.mxu0 0.0
        %480 = vmatpush2.xpose.msra.mxu0 0.0
        %481 = vmatprep.subr.mxu0 0.0
        %482 = vmatpush2.xpose.msra.mxu0 0.0
        %483 = vmatprep.subr.mxu0 0.0
        %484 = vmatpush2.xpose.msra.mxu0 0.0
        %485 = vmatprep.subr.mxu0 0.0
        %486 = vmatpush2.xpose.msra.mxu0 0.0
        %487 = vmatprep.subr.mxu0 0.0
        %488 = vmatpush2.xpose.msra.mxu0 0.0
        %489 = vmatprep.subr.mxu0 0.0
        %490 = vmatpush2.xpose.msra.mxu0 0.0
        %491 = vmatprep.mubr.f32.mxu0 0.0
        %492 = vmatmul.mubr.f32.gmra.mxu0 %v413
        %v493 = vpop.f32.mrf.mxu0
        %v494 = vadd.f32 0.0, %v493
        %v495 = vpop.f32.mrf.mxu0
        %496 = vdwg.mxu0
        %v497 = vld [vmem:[%s6] sm:$0xff]
        %v498 = vld [vmem:[%s6 + $0x8] sm:$0xff]
        %v499 = vld [vmem:[%s6 + $0x10] sm:$0xff]
        %v500 = vld [vmem:[%s6 + $0x18] sm:$0xff]
        %v502 = vsel %vm322, %v317, 0
        %v505 = vsel %vm322, %v497, 0
        %v508 = vsel %vm322, %v498, 0
        %v511 = vsel %vm322, %v499, 0
        %v514 = vsel %vm322, %v500, 0
        %516 = vmatprep.subr.mxu0 0.0
        %517 = vmatpush1.xpose.msra.mxu0 0.0
        %518 = vmatprep.subr.mxu0 0.0
        %519 = vmatpush1.xpose.msra.mxu0 0.0
        %520 = vmatprep.subr.mxu0 0.0
        %521 = vmatpush1.xpose.msra.mxu0 0.0
        %522 = vmatprep.subr.mxu0 0.0
        %523 = vmatpush1.xpose.msra.mxu0 0.0
        %524 = vmatprep.subr.mxu0 0.0
        %525 = vmatpush1.xpose.msra.mxu0 0.0
        %526 = vmatprep.subr.mxu0 0.0
        %527 = vmatpush1.xpose.msra.mxu0 0.0
        %528 = vmatprep.subr.mxu0 0.0
        %529 = vmatpush1.xpose.msra.mxu0 0.0
        %530 = vmatprep.subr.mxu0 0.0
        %531 = vmatpush1.xpose.msra.mxu0 0.0
        %532 = vmatprep.subr.mxu0 0.0
        %533 = vmatpush1.xpose.msra.mxu0 0.0
        %534 = vmatprep.subr.mxu0 0.0
        %535 = vmatpush1.xpose.msra.mxu0 0.0
        %536 = vmatprep.subr.mxu0 0.0
        %537 = vmatpush1.xpose.msra.mxu0 0.0
        %538 = vmatprep.subr.mxu0 0.0
        %539 = vmatpush1.xpose.msra.mxu0 0.0
        %540 = vmatprep.subr.mxu0 0.0
        %541 = vmatpush1.xpose.msra.mxu0 %v514
        %542 = vmatprep.subr.mxu0 0.0
        %543 = vmatpush1.xpose.msra.mxu0 %v511
        %544 = vmatprep.subr.mxu0 0.0
        %545 = vmatpush1.xpose.msra.mxu0 %v508
        %546 = vmatprep.subr.mxu0 0.0
        %547 = vmatpush1.xpose.msra.mxu0 %v505
        %548 = vmatprep.subr.mxu0 0.0
        %549 = vmatpush2.xpose.msra.mxu0 0.0
        %550 = vmatprep.subr.mxu0 0.0
        %551 = vmatpush2.xpose.msra.mxu0 0.0
        %552 = vmatprep.subr.mxu0 0.0
        %553 = vmatpush2.xpose.msra.mxu0 0.0
        %554 = vmatprep.subr.mxu0 0.0
        %555 = vmatpush2.xpose.msra.mxu0 0.0
        %556 = vmatprep.subr.mxu0 0.0
        %557 = vmatpush2.xpose.msra.mxu0 0.0
        %558 = vmatprep.subr.mxu0 0.0
        %559 = vmatpush2.xpose.msra.mxu0 0.0
        %560 = vmatprep.subr.mxu0 0.0
        %561 = vmatpush2.xpose.msra.mxu0 0.0
        %562 = vmatprep.subr.mxu0 0.0
        %563 = vmatpush2.xpose.msra.mxu0 0.0
        %564 = vmatprep.subr.mxu0 0.0
        %565 = vmatpush2.xpose.msra.mxu0 0.0
        %566 = vmatprep.subr.mxu0 0.0
        %567 = vmatpush2.xpose.msra.mxu0 0.0
        %568 = vmatprep.subr.mxu0 0.0
        %569 = vmatpush2.xpose.msra.mxu0 0.0
        %570 = vmatprep.subr.mxu0 0.0
        %571 = vmatpush2.xpose.msra.mxu0 0.0
        %572 = vmatprep.subr.mxu0 0.0
        %573 = vmatpush2.xpose.msra.mxu0 0.0
        %574 = vmatprep.subr.mxu0 0.0
        %575 = vmatpush2.xpose.msra.mxu0 0.0
        %576 = vmatprep.subr.mxu0 0.0
        %577 = vmatpush2.xpose.msra.mxu0 0.0
        %578 = vmatprep.subr.mxu0 0.0
        %579 = vmatpush2.xpose.msra.mxu0 0.0
        %580 = vmatprep.mubr.f32.mxu0 0.0
        %581 = vmatmul.mubr.f32.gmra.mxu0 %v502
        %v582 = vpop.f32.mrf.mxu0
        %v583 = vadd.f32 0.0, %v582
        %v584 = vpop.f32.mrf.mxu0
        %585 = vdwg.mxu0
        %v586 = vmul.f32 %v405, 0.35355338
        %s587 = sld [smem:[#allocation3 + %s28]]
        %v588 = vlaneseq
        %v589 = vand.u32 %v588, 127
        %v590 = vstv %s587
        %vm591 = vcmp.lt.s32.totalorder %v589, %v590
        %vm592 = vcmask 64512
        %v594 = vsel %vm592, %v586, 0
        %v597 = vsel %vm592, %v494, 0
        %599 = vmatprep.subr.mxu0 0.0
        %600 = vmatpush1.xpose.msra.mxu0 0.0
        %601 = vmatprep.subr.mxu0 0.0
        %602 = vmatpush1.xpose.msra.mxu0 0.0
        %603 = vmatprep.subr.mxu0 0.0
        %604 = vmatpush1.xpose.msra.mxu0 0.0
        %605 = vmatprep.subr.mxu0 0.0
        %606 = vmatpush1.xpose.msra.mxu0 0.0
        %607 = vmatprep.subr.mxu0 0.0
        %608 = vmatpush1.xpose.msra.mxu0 0.0
        %609 = vmatprep.subr.mxu0 0.0
        %610 = vmatpush1.xpose.msra.mxu0 0.0
        %611 = vmatprep.subr.mxu0 0.0
        %612 = vmatpush1.xpose.msra.mxu0 0.0
        %613 = vmatprep.subr.mxu0 0.0
        %614 = vmatpush1.xpose.msra.mxu0 0.0
        %615 = vmatprep.subr.mxu0 0.0
        %616 = vmatpush1.xpose.msra.mxu0 0.0
        %617 = vmatprep.subr.mxu0 0.0
        %618 = vmatpush1.xpose.msra.mxu0 0.0
        %619 = vmatprep.subr.mxu0 0.0
        %620 = vmatpush1.xpose.msra.mxu0 0.0
        %621 = vmatprep.subr.mxu0 0.0
        %622 = vmatpush1.xpose.msra.mxu0 0.0
        %623 = vmatprep.subr.mxu0 0.0
        %624 = vmatpush1.xpose.msra.mxu0 0.0
        %625 = vmatprep.subr.mxu0 0.0
        %626 = vmatpush1.xpose.msra.mxu0 0.0
        %627 = vmatprep.subr.mxu0 0.0
        %628 = vmatpush1.xpose.msra.mxu0 0.0
        %629 = vmatprep.subr.mxu0 0.0
        %630 = vmatpush1.xpose.msra.mxu0 %v597
        %631 = vmatprep.subr.mxu0 0.0
        %632 = vmatpush2.xpose.msra.mxu0 0.0
        %633 = vmatprep.subr.mxu0 0.0
        %634 = vmatpush2.xpose.msra.mxu0 0.0
        %635 = vmatprep.subr.mxu0 0.0
        %636 = vmatpush2.xpose.msra.mxu0 0.0
        %637 = vmatprep.subr.mxu0 0.0
        %638 = vmatpush2.xpose.msra.mxu0 0.0
        %639 = vmatprep.subr.mxu0 0.0
        %640 = vmatpush2.xpose.msra.mxu0 0.0
        %641 = vmatprep.subr.mxu0 0.0
        %642 = vmatpush2.xpose.msra.mxu0 0.0
        %643 = vmatprep.subr.mxu0 0.0
        %644 = vmatpush2.xpose.msra.mxu0 0.0
        %645 = vmatprep.subr.mxu0 0.0
        %646 = vmatpush2.xpose.msra.mxu0 0.0
        %647 = vmatprep.subr.mxu0 0.0
        %648 = vmatpush2.xpose.msra.mxu0 0.0
        %649 = vmatprep.subr.mxu0 0.0
        %650 = vmatpush2.xpose.msra.mxu0 0.0
        %651 = vmatprep.subr.mxu0 0.0
        %652 = vmatpush2.xpose.msra.mxu0 0.0
        %653 = vmatprep.subr.mxu0 0.0
        %654 = vmatpush2.xpose.msra.mxu0 0.0
        %655 = vmatprep.subr.mxu0 0.0
        %656 = vmatpush2.xpose.msra.mxu0 0.0
        %657 = vmatprep.subr.mxu0 0.0
        %658 = vmatpush2.xpose.msra.mxu0 0.0
        %659 = vmatprep.subr.mxu0 0.0
        %660 = vmatpush2.xpose.msra.mxu0 0.0
        %661 = vmatprep.subr.mxu0 0.0
        %662 = vmatpush2.xpose.msra.mxu0 0.0
        %663 = vmatprep.mubr.f32.mxu0 0.0
        %664 = vmatmul.mubr.f32.gmra.mxu0 %v594
        %v665 = vpop.f32.mrf.mxu0
        %v666 = vadd.f32 0.0, %v665
        %v667 = vpop.f32.mrf.mxu0
        %668 = vdwg.mxu0
        %v669 = vsel %vm591, %v666, -1000000.0
        %v670 = vsel %vm592, %v669, -inf
        %671 = vmax.xlane.f32.xlu0 %v670
        %v672 = vpop.xlane.xlu0 %671
        %v673 = vsub.f32 %v669, %v672
        %v674 = vmul.f32 %v673, 1.442695
        %v675 = vpow.pop %v674
        %v676 = vsel %vm592, %v675, 0.0
        %677 = vadd.xlane.f32.xlu0 %v676
        %v678 = vpop.xlane.xlu0 %677
        %v679 = vrcp.pop %v678
        %v680 = vmul.f32 %v675, %v679
        %v682 = vsel %vm592, %v680, 0
        %684 = vmatprep.subr.mxu0 0.0
        %685 = vmatpush1.msra.mxu0 0.0
        %686 = vmatprep.subr.mxu0 0.0
        %687 = vmatpush1.msra.mxu0 0.0
        %688 = vmatprep.subr.mxu0 0.0
        %689 = vmatpush1.msra.mxu0 0.0
        %690 = vmatprep.subr.mxu0 0.0
        %691 = vmatpush1.msra.mxu0 0.0
        %692 = vmatprep.subr.mxu0 0.0
        %693 = vmatpush1.msra.mxu0 0.0
        %694 = vmatprep.subr.mxu0 0.0
        %695 = vmatpush1.msra.mxu0 0.0
        %696 = vmatprep.subr.mxu0 0.0
        %697 = vmatpush1.msra.mxu0 0.0
        %698 = vmatprep.subr.mxu0 0.0
        %699 = vmatpush1.msra.mxu0 0.0
        %700 = vmatprep.subr.mxu0 0.0
        %701 = vmatpush1.msra.mxu0 0.0
        %702 = vmatprep.subr.mxu0 0.0
        %703 = vmatpush1.msra.mxu0 0.0
        %704 = vmatprep.subr.mxu0 0.0
        %705 = vmatpush1.msra.mxu0 0.0
        %706 = vmatprep.subr.mxu0 0.0
        %707 = vmatpush1.msra.mxu0 0.0
        %708 = vmatprep.subr.mxu0 0.0
        %709 = vmatpush1.msra.mxu0 0.0
        %710 = vmatprep.subr.mxu0 0.0
        %711 = vmatpush1.msra.mxu0 0.0
        %712 = vmatprep.subr.mxu0 0.0
        %713 = vmatpush1.msra.mxu0 0.0
        %714 = vmatprep.subr.mxu0 0.0
        %715 = vmatpush1.msra.mxu0 %v583
        %716 = vmatprep.subr.mxu0 0.0
        %717 = vmatpush2.msra.mxu0 0.0
        %718 = vmatprep.subr.mxu0 0.0
        %719 = vmatpush2.msra.mxu0 0.0
        %720 = vmatprep.subr.mxu0 0.0
        %721 = vmatpush2.msra.mxu0 0.0
        %722 = vmatprep.subr.mxu0 0.0
        %723 = vmatpush2.msra.mxu0 0.0
        %724 = vmatprep.subr.mxu0 0.0
        %725 = vmatpush2.msra.mxu0 0.0
        %726 = vmatprep.subr.mxu0 0.0
        %727 = vmatpush2.msra.mxu0 0.0
        %728 = vmatprep.subr.mxu0 0.0
        %729 = vmatpush2.msra.mxu0 0.0
        %730 = vmatprep.subr.mxu0 0.0
        %731 = vmatpush2.msra.mxu0 0.0
        %732 = vmatprep.subr.mxu0 0.0
        %733 = vmatpush2.msra.mxu0 0.0
        %734 = vmatprep.subr.mxu0 0.0
        %735 = vmatpush2.msra.mxu0 0.0
        %736 = vmatprep.subr.mxu0 0.0
        %737 = vmatpush2.msra.mxu0 0.0
        %738 = vmatprep.subr.mxu0 0.0
        %739 = vmatpush2.msra.mxu0 0.0
        %740 = vmatprep.subr.mxu0 0.0
        %741 = vmatpush2.msra.mxu0 0.0
        %742 = vmatprep.subr.mxu0 0.0
        %743 = vmatpush2.msra.mxu0 0.0
        %744 = vmatprep.subr.mxu0 0.0
        %745 = vmatpush2.msra.mxu0 0.0
        %746 = vmatprep.subr.mxu0 0.0
        %747 = vmatpush2.msra.mxu0 0.0
        %748 = vmatprep.mubr.f32.mxu0 0.0
        %749 = vmatmul.mubr.f32.gmra.mxu0 %v682
        %v750 = vpop.f32.mrf.mxu0
        %v751 = vadd.f32 0.0, %v750
        %v752 = vpop.f32.mrf.mxu0
        %753 = vdwg.mxu0
        %754 = vrot.lane.b32.xlu0 %v586, 120
        %v755 = vpop.permute.xlu0 %754
        %756 = vrot.lane.b32.xlu0 %v494, 120
        %v757 = vpop.permute.xlu0 %756
        %v758 = vsel %vm592, %v755, 0
        %v760 = vsel %vm592, %v757, 0
        %762 = vmatprep.subr.mxu0 0.0
        %763 = vmatpush1.xpose.msra.mxu0 0.0
        %764 = vmatprep.subr.mxu0 0.0
        %765 = vmatpush1.xpose.msra.mxu0 0.0
        %766 = vmatprep.subr.mxu0 0.0
        %767 = vmatpush1.xpose.msra.mxu0 0.0
        %768 = vmatprep.subr.mxu0 0.0
        %769 = vmatpush1.xpose.msra.mxu0 0.0
        %770 = vmatprep.subr.mxu0 0.0
        %771 = vmatpush1.xpose.msra.mxu0 0.0
        %772 = vmatprep.subr.mxu0 0.0
        %773 = vmatpush1.xpose.msra.mxu0 0.0
        %774 = vmatprep.subr.mxu0 0.0
        %775 = vmatpush1.xpose.msra.mxu0 0.0
        %776 = vmatprep.subr.mxu0 0.0
        %777 = vmatpush1.xpose.msra.mxu0 0.0
        %778 = vmatprep.subr.mxu0 0.0
        %779 = vmatpush1.xpose.msra.mxu0 0.0
        %780 = vmatprep.subr.mxu0 0.0
        %781 = vmatpush1.xpose.msra.mxu0 0.0
        %782 = vmatprep.subr.mxu0 0.0
        %783 = vmatpush1.xpose.msra.mxu0 0.0
        %784 = vmatprep.subr.mxu0 0.0
        %785 = vmatpush1.xpose.msra.mxu0 0.0
        %786 = vmatprep.subr.mxu0 0.0
        %787 = vmatpush1.xpose.msra.mxu0 0.0
        %788 = vmatprep.subr.mxu0 0.0
        %789 = vmatpush1.xpose.msra.mxu0 0.0
        %790 = vmatprep.subr.mxu0 0.0
        %791 = vmatpush1.xpose.msra.mxu0 0.0
        %792 = vmatprep.subr.mxu0 0.0
        %793 = vmatpush1.xpose.msra.mxu0 %v760
        %794 = vmatprep.subr.mxu0 0.0
        %795 = vmatpush2.xpose.msra.mxu0 0.0
        %796 = vmatprep.subr.mxu0 0.0
        %797 = vmatpush2.xpose.msra.mxu0 0.0
        %798 = vmatprep.subr.mxu0 0.0
        %799 = vmatpush2.xpose.msra.mxu0 0.0
        %800 = vmatprep.subr.mxu0 0.0
        %801 = vmatpush2.xpose.msra.mxu0 0.0
        %802 = vmatprep.subr.mxu0 0.0
        %803 = vmatpush2.xpose.msra.mxu0 0.0
        %804 = vmatprep.subr.mxu0 0.0
        %805 = vmatpush2.xpose.msra.mxu0 0.0
        %806 = vmatprep.subr.mxu0 0.0
        %807 = vmatpush2.xpose.msra.mxu0 0.0
        %808 = vmatprep.subr.mxu0 0.0
        %809 = vmatpush2.xpose.msra.mxu0 0.0
        %810 = vmatprep.subr.mxu0 0.0
        %811 = vmatpush2.xpose.msra.mxu0 0.0
        %812 = vmatprep.subr.mxu0 0.0
        %813 = vmatpush2.xpose.msra.mxu0 0.0
        %814 = vmatprep.subr.mxu0 0.0
        %815 = vmatpush2.xpose.msra.mxu0 0.0
        %816 = vmatprep.subr.mxu0 0.0
        %817 = vmatpush2.xpose.msra.mxu0 0.0
        %818 = vmatprep.subr.mxu0 0.0
        %819 = vmatpush2.xpose.msra.mxu0 0.0
        %820 = vmatprep.subr.mxu0 0.0
        %821 = vmatpush2.xpose.msra.mxu0 0.0
        %822 = vmatprep.subr.mxu0 0.0
        %823 = vmatpush2.xpose.msra.mxu0 0.0
        %824 = vmatprep.subr.mxu0 0.0
        %825 = vmatpush2.xpose.msra.mxu0 0.0
        %826 = vmatprep.mubr.f32.mxu0 0.0
        %827 = vmatmul.mubr.f32.gmra.mxu0 %v758
        %v828 = vpop.f32.mrf.mxu0
        %v829 = vadd.f32 0.0, %v828
        %v830 = vpop.f32.mrf.mxu0
        %831 = vdwg.mxu0
        %v832 = vsel %vm591, %v829, -1000000.0
        %v833 = vsel %vm592, %v832, -inf
        %834 = vmax.xlane.f32.xlu0 %v833
        %v835 = vpop.xlane.xlu0 %834
        %v836 = vsub.f32 %v832, %v835
        %v837 = vmul.f32 %v836, 1.442695
        %v838 = vpow.pop %v837
        %v839 = vsel %vm592, %v838, 0.0
        %840 = vadd.xlane.f32.xlu0 %v839
        %v841 = vpop.xlane.xlu0 %840
        %v842 = vrcp.pop %v841
        %v843 = vmul.f32 %v838, %v842
        %845 = vrot.lane.b32.xlu0 %v583, 120
        %v846 = vpop.permute.xlu0 %845
        %v849 = vsel %vm592, %v843, 0
        %851 = vmatprep.subr.mxu0 0.0
        %852 = vmatpush1.msra.mxu0 0.0
        %853 = vmatprep.subr.mxu0 0.0
        %854 = vmatpush1.msra.mxu0 0.0
        %855 = vmatprep.subr.mxu0 0.0
        %856 = vmatpush1.msra.mxu0 0.0
        %857 = vmatprep.subr.mxu0 0.0
        %858 = vmatpush1.msra.mxu0 0.0
        %859 = vmatprep.subr.mxu0 0.0
        %860 = vmatpush1.msra.mxu0 0.0
        %861 = vmatprep.subr.mxu0 0.0
        %862 = vmatpush1.msra.mxu0 0.0
        %863 = vmatprep.subr.mxu0 0.0
        %864 = vmatpush1.msra.mxu0 0.0
        %865 = vmatprep.subr.mxu0 0.0
        %866 = vmatpush1.msra.mxu0 0.0
        %867 = vmatprep.subr.mxu0 0.0
        %868 = vmatpush1.msra.mxu0 0.0
        %869 = vmatprep.subr.mxu0 0.0
        %870 = vmatpush1.msra.mxu0 0.0
        %871 = vmatprep.subr.mxu0 0.0
        %872 = vmatpush1.msra.mxu0 0.0
        %873 = vmatprep.subr.mxu0 0.0
        %874 = vmatpush1.msra.mxu0 0.0
        %875 = vmatprep.subr.mxu0 0.0
        %876 = vmatpush1.msra.mxu0 0.0
        %877 = vmatprep.subr.mxu0 0.0
        %878 = vmatpush1.msra.mxu0 0.0
        %879 = vmatprep.subr.mxu0 0.0
        %880 = vmatpush1.msra.mxu0 0.0
        %881 = vmatprep.subr.mxu0 0.0
        %882 = vmatpush1.msra.mxu0 %v846
        %883 = vmatprep.subr.mxu0 0.0
        %884 = vmatpush2.msra.mxu0 0.0
        %885 = vmatprep.subr.mxu0 0.0
        %886 = vmatpush2.msra.mxu0 0.0
        %887 = vmatprep.subr.mxu0 0.0
        %888 = vmatpush2.msra.mxu0 0.0
        %889 = vmatprep.subr.mxu0 0.0
        %890 = vmatpush2.msra.mxu0 0.0
        %891 = vmatprep.subr.mxu0 0.0
        %892 = vmatpush2.msra.mxu0 0.0
        %893 = vmatprep.subr.mxu0 0.0
        %894 = vmatpush2.msra.mxu0 0.0
        %895 = vmatprep.subr.mxu0 0.0
        %896 = vmatpush2.msra.mxu0 0.0
        %897 = vmatprep.subr.mxu0 0.0
        %898 = vmatpush2.msra.mxu0 0.0
        %899 = vmatprep.subr.mxu0 0.0
        %900 = vmatpush2.msra.mxu0 0.0
        %901 = vmatprep.subr.mxu0 0.0
        %902 = vmatpush2.msra.mxu0 0.0
        %903 = vmatprep.subr.mxu0 0.0
        %904 = vmatpush2.msra.mxu0 0.0
        %905 = vmatprep.subr.mxu0 0.0
        %906 = vmatpush2.msra.mxu0 0.0
        %907 = vmatprep.subr.mxu0 0.0
        %908 = vmatpush2.msra.mxu0 0.0
        %909 = vmatprep.subr.mxu0 0.0
        %910 = vmatpush2.msra.mxu0 0.0
        %911 = vmatprep.subr.mxu0 0.0
        %912 = vmatpush2.msra.mxu0 0.0
        %913 = vmatprep.subr.mxu0 0.0
        %914 = vmatpush2.msra.mxu0 0.0
        %915 = vmatprep.mubr.f32.mxu0 0.0
        %916 = vmatmul.mubr.f32.gmra.mxu0 %v849
        %v917 = vpop.f32.mrf.mxu0
        %v918 = vadd.f32 0.0, %v917
        %v919 = vpop.f32.mrf.mxu0
        %920 = vdwg.mxu0
        %921 = vrot.lane.b32.xlu0 %v586, 112
        %v922 = vpop.permute.xlu0 %921
        %923 = vrot.lane.b32.xlu0 %v494, 112
        %v924 = vpop.permute.xlu0 %923
        %v925 = vsel %vm592, %v922, 0
        %v927 = vsel %vm592, %v924, 0
        %929 = vmatprep.subr.mxu0 0.0
        %930 = vmatpush1.xpose.msra.mxu0 0.0
        %931 = vmatprep.subr.mxu0 0.0
        %932 = vmatpush1.xpose.msra.mxu0 0.0
        %933 = vmatprep.subr.mxu0 0.0
        %934 = vmatpush1.xpose.msra.mxu0 0.0
        %935 = vmatprep.subr.mxu0 0.0
        %936 = vmatpush1.xpose.msra.mxu0 0.0
        %937 = vmatprep.subr.mxu0 0.0
        %938 = vmatpush1.xpose.msra.mxu0 0.0
        %939 = vmatprep.subr.mxu0 0.0
        %940 = vmatpush1.xpose.msra.mxu0 0.0
        %941 = vmatprep.subr.mxu0 0.0
        %942 = vmatpush1.xpose.msra.mxu0 0.0
        %943 = vmatprep.subr.mxu0 0.0
        %944 = vmatpush1.xpose.msra.mxu0 0.0
        %945 = vmatprep.subr.mxu0 0.0
        %946 = vmatpush1.xpose.msra.mxu0 0.0
        %947 = vmatprep.subr.mxu0 0.0
        %948 = vmatpush1.xpose.msra.mxu0 0.0
        %949 = vmatprep.subr.mxu0 0.0
        %950 = vmatpush1.xpose.msra.mxu0 0.0
        %951 = vmatprep.subr.mxu0 0.0
        %952 = vmatpush1.xpose.msra.mxu0 0.0
        %953 = vmatprep.subr.mxu0 0.0
        %954 = vmatpush1.xpose.msra.mxu0 0.0
        %955 = vmatprep.subr.mxu0 0.0
        %956 = vmatpush1.xpose.msra.mxu0 0.0
        %957 = vmatprep.subr.mxu0 0.0
        %958 = vmatpush1.xpose.msra.mxu0 0.0
        %959 = vmatprep.subr.mxu0 0.0
        %960 = vmatpush1.xpose.msra.mxu0 %v927
        %961 = vmatprep.subr.mxu0 0.0
        %962 = vmatpush2.xpose.msra.mxu0 0.0
        %963 = vmatprep.subr.mxu0 0.0
        %964 = vmatpush2.xpose.msra.mxu0 0.0
        %965 = vmatprep.subr.mxu0 0.0
        %966 = vmatpush2.xpose.msra.mxu0 0.0
        %967 = vmatprep.subr.mxu0 0.0
        %968 = vmatpush2.xpose.msra.mxu0 0.0
        %969 = vmatprep.subr.mxu0 0.0
        %970 = vmatpush2.xpose.msra.mxu0 0.0
        %971 = vmatprep.subr.mxu0 0.0
        %972 = vmatpush2.xpose.msra.mxu0 0.0
        %973 = vmatprep.subr.mxu0 0.0
        %974 = vmatpush2.xpose.msra.mxu0 0.0
        %975 = vmatprep.subr.mxu0 0.0
        %976 = vmatpush2.xpose.msra.mxu0 0.0
        %977 = vmatprep.subr.mxu0 0.0
        %978 = vmatpush2.xpose.msra.mxu0 0.0
        %979 = vmatprep.subr.mxu0 0.0
        %980 = vmatpush2.xpose.msra.mxu0 0.0
        %981 = vmatprep.subr.mxu0 0.0
        %982 = vmatpush2.xpose.msra.mxu0 0.0
        %983 = vmatprep.subr.mxu0 0.0
        %984 = vmatpush2.xpose.msra.mxu0 0.0
        %985 = vmatprep.subr.mxu0 0.0
        %986 = vmatpush2.xpose.msra.mxu0 0.0
        %987 = vmatprep.subr.mxu0 0.0
        %988 = vmatpush2.xpose.msra.mxu0 0.0
        %989 = vmatprep.subr.mxu0 0.0
        %990 = vmatpush2.xpose.msra.mxu0 0.0
        %991 = vmatprep.subr.mxu0 0.0
        %992 = vmatpush2.xpose.msra.mxu0 0.0
        %993 = vmatprep.mubr.f32.mxu0 0.0
        %994 = vmatmul.mubr.f32.gmra.mxu0 %v925
        %v995 = vpop.f32.mrf.mxu0
        %v996 = vadd.f32 0.0, %v995
        %v997 = vpop.f32.mrf.mxu0
        %998 = vdwg.mxu0
        %v999 = vsel %vm591, %v996, -1000000.0
        %v1000 = vsel %vm592, %v999, -inf
        %1001 = vmax.xlane.f32.xlu0 %v1000
        %v1002 = vpop.xlane.xlu0 %1001
        %v1003 = vsub.f32 %v999, %v1002
        %v1004 = vmul.f32 %v1003, 1.442695
        %v1005 = vpow.pop %v1004
        %v1006 = vsel %vm592, %v1005, 0.0
        %1007 = vadd.xlane.f32.xlu0 %v1006
        %v1008 = vpop.xlane.xlu0 %1007
        %v1009 = vrcp.pop %v1008
        %v1010 = vmul.f32 %v1005, %v1009
        %1011 = vrot.lane.b32.xlu0 %v583, 112
        %v1012 = vpop.permute.xlu0 %1011
        %v1015 = vsel %vm592, %v1010, 0
        %1017 = vmatprep.subr.mxu0 0.0
        %1018 = vmatpush1.msra.mxu0 0.0
        %1019 = vmatprep.subr.mxu0 0.0
        %1020 = vmatpush1.msra.mxu0 0.0
        %1021 = vmatprep.subr.mxu0 0.0
        %1022 = vmatpush1.msra.mxu0 0.0
        %1023 = vmatprep.subr.mxu0 0.0
        %1024 = vmatpush1.msra.mxu0 0.0
        %1025 = vmatprep.subr.mxu0 0.0
        %1026 = vmatpush1.msra.mxu0 0.0
        %1027 = vmatprep.subr.mxu0 0.0
        %1028 = vmatpush1.msra.mxu0 0.0
        %1029 = vmatprep.subr.mxu0 0.0
        %1030 = vmatpush1.msra.mxu0 0.0
        %1031 = vmatprep.subr.mxu0 0.0
        %1032 = vmatpush1.msra.mxu0 0.0
        %1033 = vmatprep.subr.mxu0 0.0
        %1034 = vmatpush1.msra.mxu0 0.0
        %1035 = vmatprep.subr.mxu0 0.0
        %1036 = vmatpush1.msra.mxu0 0.0
        %1037 = vmatprep.subr.mxu0 0.0
        %1038 = vmatpush1.msra.mxu0 0.0
        %1039 = vmatprep.subr.mxu0 0.0
        %1040 = vmatpush1.msra.mxu0 0.0
        %1041 = vmatprep.subr.mxu0 0.0
        %1042 = vmatpush1.msra.mxu0 0.0
        %1043 = vmatprep.subr.mxu0 0.0
        %1044 = vmatpush1.msra.mxu0 0.0
        %1045 = vmatprep.subr.mxu0 0.0
        %1046 = vmatpush1.msra.mxu0 0.0
        %1047 = vmatprep.subr.mxu0 0.0
        %1048 = vmatpush1.msra.mxu0 %v1012
        %1049 = vmatprep.subr.mxu0 0.0
        %1050 = vmatpush2.msra.mxu0 0.0
        %1051 = vmatprep.subr.mxu0 0.0
        %1052 = vmatpush2.msra.mxu0 0.0
        %1053 = vmatprep.subr.mxu0 0.0
        %1054 = vmatpush2.msra.mxu0 0.0
        %1055 = vmatprep.subr.mxu0 0.0
        %1056 = vmatpush2.msra.mxu0 0.0
        %1057 = vmatprep.subr.mxu0 0.0
        %1058 = vmatpush2.msra.mxu0 0.0
        %1059 = vmatprep.subr.mxu0 0.0
        %1060 = vmatpush2.msra.mxu0 0.0
        %1061 = vmatprep.subr.mxu0 0.0
        %1062 = vmatpush2.msra.mxu0 0.0
        %1063 = vmatprep.subr.mxu0 0.0
        %1064 = vmatpush2.msra.mxu0 0.0
        %1065 = vmatprep.subr.mxu0 0.0
        %1066 = vmatpush2.msra.mxu0 0.0
        %1067 = vmatprep.subr.mxu0 0.0
        %1068 = vmatpush2.msra.mxu0 0.0
        %1069 = vmatprep.subr.mxu0 0.0
        %1070 = vmatpush2.msra.mxu0 0.0
        %1071 = vmatprep.subr.mxu0 0.0
        %1072 = vmatpush2.msra.mxu0 0.0
        %1073 = vmatprep.subr.mxu0 0.0
        %1074 = vmatpush2.msra.mxu0 0.0
        %1075 = vmatprep.subr.mxu0 0.0
        %1076 = vmatpush2.msra.mxu0 0.0
        %1077 = vmatprep.subr.mxu0 0.0
        %1078 = vmatpush2.msra.mxu0 0.0
        %1079 = vmatprep.subr.mxu0 0.0
        %1080 = vmatpush2.msra.mxu0 0.0
        %1081 = vmatprep.mubr.f32.mxu0 0.0
        %1082 = vmatmul.mubr.f32.gmra.mxu0 %v1015
        %v1083 = vpop.f32.mrf.mxu0
        %v1084 = vadd.f32 0.0, %v1083
        %v1085 = vpop.f32.mrf.mxu0
        %1086 = vdwg.mxu0
        %1087 = vrot.lane.b32.xlu0 %v586, 104
        %v1088 = vpop.permute.xlu0 %1087
        %1089 = vrot.lane.b32.xlu0 %v494, 104
        %v1090 = vpop.permute.xlu0 %1089
        %v1091 = vsel %vm592, %v1088, 0
        %v1093 = vsel %vm592, %v1090, 0
        %1095 = vmatprep.subr.mxu0 0.0
        %1096 = vmatpush1.xpose.msra.mxu0 0.0
        %1097 = vmatprep.subr.mxu0 0.0
        %1098 = vmatpush1.xpose.msra.mxu0 0.0
        %1099 = vmatprep.subr.mxu0 0.0
        %1100 = vmatpush1.xpose.msra.mxu0 0.0
        %1101 = vmatprep.subr.mxu0 0.0
        %1102 = vmatpush1.xpose.msra.mxu0 0.0
        %1103 = vmatprep.subr.mxu0 0.0
        %1104 = vmatpush1.xpose.msra.mxu0 0.0
        %1105 = vmatprep.subr.mxu0 0.0
        %1106 = vmatpush1.xpose.msra.mxu0 0.0
        %1107 = vmatprep.subr.mxu0 0.0
        %1108 = vmatpush1.xpose.msra.mxu0 0.0
        %1109 = vmatprep.subr.mxu0 0.0
        %1110 = vmatpush1.xpose.msra.mxu0 0.0
        %1111 = vmatprep.subr.mxu0 0.0
        %1112 = vmatpush1.xpose.msra.mxu0 0.0
        %1113 = vmatprep.subr.mxu0 0.0
        %1114 = vmatpush1.xpose.msra.mxu0 0.0
        %1115 = vmatprep.subr.mxu0 0.0
        %1116 = vmatpush1.xpose.msra.mxu0 0.0
        %1117 = vmatprep.subr.mxu0 0.0
        %1118 = vmatpush1.xpose.msra.mxu0 0.0
        %1119 = vmatprep.subr.mxu0 0.0
        %1120 = vmatpush1.xpose.msra.mxu0 0.0
        %1121 = vmatprep.subr.mxu0 0.0
        %1122 = vmatpush1.xpose.msra.mxu0 0.0
        %1123 = vmatprep.subr.mxu0 0.0
        %1124 = vmatpush1.xpose.msra.mxu0 0.0
        %1125 = vmatprep.subr.mxu0 0.0
        %1126 = vmatpush1.xpose.msra.mxu0 %v1093
        %1127 = vmatprep.subr.mxu0 0.0
        %1128 = vmatpush2.xpose.msra.mxu0 0.0
        %1129 = vmatprep.subr.mxu0 0.0
        %1130 = vmatpush2.xpose.msra.mxu0 0.0
        %1131 = vmatprep.subr.mxu0 0.0
        %1132 = vmatpush2.xpose.msra.mxu0 0.0
        %1133 = vmatprep.subr.mxu0 0.0
        %1134 = vmatpush2.xpose.msra.mxu0 0.0
        %1135 = vmatprep.subr.mxu0 0.0
        %1136 = vmatpush2.xpose.msra.mxu0 0.0
        %1137 = vmatprep.subr.mxu0 0.0
        %1138 = vmatpush2.xpose.msra.mxu0 0.0
        %1139 = vmatprep.subr.mxu0 0.0
        %1140 = vmatpush2.xpose.msra.mxu0 0.0
        %1141 = vmatprep.subr.mxu0 0.0
        %1142 = vmatpush2.xpose.msra.mxu0 0.0
        %1143 = vmatprep.subr.mxu0 0.0
        %1144 = vmatpush2.xpose.msra.mxu0 0.0
        %1145 = vmatprep.subr.mxu0 0.0
        %1146 = vmatpush2.xpose.msra.mxu0 0.0
        %1147 = vmatprep.subr.mxu0 0.0
        %1148 = vmatpush2.xpose.msra.mxu0 0.0
        %1149 = vmatprep.subr.mxu0 0.0
        %1150 = vmatpush2.xpose.msra.mxu0 0.0
        %1151 = vmatprep.subr.mxu0 0.0
        %1152 = vmatpush2.xpose.msra.mxu0 0.0
        %1153 = vmatprep.subr.mxu0 0.0
        %1154 = vmatpush2.xpose.msra.mxu0 0.0
        %1155 = vmatprep.subr.mxu0 0.0
        %1156 = vmatpush2.xpose.msra.mxu0 0.0
        %1157 = vmatprep.subr.mxu0 0.0
        %1158 = vmatpush2.xpose.msra.mxu0 0.0
        %1159 = vmatprep.mubr.f32.mxu0 0.0
        %1160 = vmatmul.mubr.f32.gmra.mxu0 %v1091
        %v1161 = vpop.f32.mrf.mxu0
        %v1162 = vadd.f32 0.0, %v1161
        %v1163 = vpop.f32.mrf.mxu0
        %1164 = vdwg.mxu0
        %v1165 = vsel %vm591, %v1162, -1000000.0
        %v1166 = vsel %vm592, %v1165, -inf
        %1167 = vmax.xlane.f32.xlu0 %v1166
        %v1168 = vpop.xlane.xlu0 %1167
        %v1169 = vsub.f32 %v1165, %v1168
        %v1170 = vmul.f32 %v1169, 1.442695
        %v1171 = vpow.pop %v1170
        %v1172 = vsel %vm592, %v1171, 0.0
        %1173 = vadd.xlane.f32.xlu0 %v1172
        %v1174 = vpop.xlane.xlu0 %1173
        %v1175 = vrcp.pop %v1174
        %v1176 = vmul.f32 %v1171, %v1175
        %1177 = vrot.lane.b32.xlu0 %v583, 104
        %v1178 = vpop.permute.xlu0 %1177
        %v1181 = vsel %vm592, %v1176, 0
        %1183 = vmatprep.subr.mxu0 0.0
        %1184 = vmatpush1.msra.mxu0 0.0
        %1185 = vmatprep.subr.mxu0 0.0
        %1186 = vmatpush1.msra.mxu0 0.0
        %1187 = vmatprep.subr.mxu0 0.0
        %1188 = vmatpush1.msra.mxu0 0.0
        %1189 = vmatprep.subr.mxu0 0.0
        %1190 = vmatpush1.msra.mxu0 0.0
        %1191 = vmatprep.subr.mxu0 0.0
        %1192 = vmatpush1.msra.mxu0 0.0
        %1193 = vmatprep.subr.mxu0 0.0
        %1194 = vmatpush1.msra.mxu0 0.0
        %1195 = vmatprep.subr.mxu0 0.0
        %1196 = vmatpush1.msra.mxu0 0.0
        %1197 = vmatprep.subr.mxu0 0.0
        %1198 = vmatpush1.msra.mxu0 0.0
        %1199 = vmatprep.subr.mxu0 0.0
        %1200 = vmatpush1.msra.mxu0 0.0
        %1201 = vmatprep.subr.mxu0 0.0
        %1202 = vmatpush1.msra.mxu0 0.0
        %1203 = vmatprep.subr.mxu0 0.0
        %1204 = vmatpush1.msra.mxu0 0.0
        %1205 = vmatprep.subr.mxu0 0.0
        %1206 = vmatpush1.msra.mxu0 0.0
        %1207 = vmatprep.subr.mxu0 0.0
        %1208 = vmatpush1.msra.mxu0 0.0
        %1209 = vmatprep.subr.mxu0 0.0
        %1210 = vmatpush1.msra.mxu0 0.0
        %1211 = vmatprep.subr.mxu0 0.0
        %1212 = vmatpush1.msra.mxu0 0.0
        %1213 = vmatprep.subr.mxu0 0.0
        %1214 = vmatpush1.msra.mxu0 %v1178
        %1215 = vmatprep.subr.mxu0 0.0
        %1216 = vmatpush2.msra.mxu0 0.0
        %1217 = vmatprep.subr.mxu0 0.0
        %1218 = vmatpush2.msra.mxu0 0.0
        %1219 = vmatprep.subr.mxu0 0.0
        %1220 = vmatpush2.msra.mxu0 0.0
        %1221 = vmatprep.subr.mxu0 0.0
        %1222 = vmatpush2.msra.mxu0 0.0
        %1223 = vmatprep.subr.mxu0 0.0
        %1224 = vmatpush2.msra.mxu0 0.0
        %1225 = vmatprep.subr.mxu0 0.0
        %1226 = vmatpush2.msra.mxu0 0.0
        %1227 = vmatprep.subr.mxu0 0.0
        %1228 = vmatpush2.msra.mxu0 0.0
        %1229 = vmatprep.subr.mxu0 0.0
        %1230 = vmatpush2.msra.mxu0 0.0
        %1231 = vmatprep.subr.mxu0 0.0
        %1232 = vmatpush2.msra.mxu0 0.0
        %1233 = vmatprep.subr.mxu0 0.0
        %1234 = vmatpush2.msra.mxu0 0.0
        %1235 = vmatprep.subr.mxu0 0.0
        %1236 = vmatpush2.msra.mxu0 0.0
        %1237 = vmatprep.subr.mxu0 0.0
        %1238 = vmatpush2.msra.mxu0 0.0
        %1239 = vmatprep.subr.mxu0 0.0
        %1240 = vmatpush2.msra.mxu0 0.0
        %1241 = vmatprep.subr.mxu0 0.0
        %1242 = vmatpush2.msra.mxu0 0.0
        %1243 = vmatprep.subr.mxu0 0.0
        %1244 = vmatpush2.msra.mxu0 0.0
        %1245 = vmatprep.subr.mxu0 0.0
        %1246 = vmatpush2.msra.mxu0 0.0
        %1247 = vmatprep.mubr.f32.mxu0 0.0
        %1248 = vmatmul.mubr.f32.gmra.mxu0 %v1181
        %v1249 = vpop.f32.mrf.mxu0
        %v1250 = vadd.f32 0.0, %v1249
        %v1251 = vpop.f32.mrf.mxu0
        %1252 = vdwg.mxu0
        %1254 = vrot.lane.b32.xlu0 %v918, 8
        %v1255 = vpop.permute.xlu0 %1254
        %1258 = vrot.lane.b32.xlu0 %v1084, 16
        %v1259 = vpop.permute.xlu0 %1258
        %1262 = vrot.lane.b32.xlu0 %v1250, 24
        %v1263 = vpop.permute.xlu0 %1262
        %v1265 = vsel %vm592, %v751, %v1255
        %v1266 = vsel %vm322, %v1265, %v1259
        %vm1267 = vcmask 195584
        %v1268 = vsel %vm1267, %v1266, %v1263
        %v1269 = vld [vmem:[%s7] sm:$0xff]
        %v1270 = vld [vmem:[%s7 + $0x8] sm:$0xff]
        %v1271 = vld [vmem:[%s7 + $0x10] sm:$0xff]
        %v1272 = vld [vmem:[%s7 + $0x18] sm:$0xff]
        %vm1273 = vcmask 261120
        %v1275 = vsel %vm1273, %v1268, 0
        %v1278 = vsel %vm1273, %v1269, 0
        %v1281 = vsel %vm1273, %v1270, 0
        %v1284 = vsel %vm1273, %v1271, 0
        %v1287 = vsel %vm1273, %v1272, 0
        %1289 = vmatprep.subr.mxu0 0.0
        %1290 = vmatpush1.xpose.msra.mxu0 0.0
        %1291 = vmatprep.subr.mxu0 0.0
        %1292 = vmatpush1.xpose.msra.mxu0 0.0
        %1293 = vmatprep.subr.mxu0 0.0
        %1294 = vmatpush1.xpose.msra.mxu0 0.0
        %1295 = vmatprep.subr.mxu0 0.0
        %1296 = vmatpush1.xpose.msra.mxu0 0.0
        %1297 = vmatprep.subr.mxu0 0.0
        %1298 = vmatpush1.xpose.msra.mxu0 0.0
        %1299 = vmatprep.subr.mxu0 0.0
        %1300 = vmatpush1.xpose.msra.mxu0 0.0
        %1301 = vmatprep.subr.mxu0 0.0
        %1302 = vmatpush1.xpose.msra.mxu0 0.0
        %1303 = vmatprep.subr.mxu0 0.0
        %1304 = vmatpush1.xpose.msra.mxu0 0.0
        %1305 = vmatprep.subr.mxu0 0.0
        %1306 = vmatpush1.xpose.msra.mxu0 0.0
        %1307 = vmatprep.subr.mxu0 0.0
        %1308 = vmatpush1.xpose.msra.mxu0 0.0
        %1309 = vmatprep.subr.mxu0 0.0
        %1310 = vmatpush1.xpose.msra.mxu0 0.0
        %1311 = vmatprep.subr.mxu0 0.0
        %1312 = vmatpush1.xpose.msra.mxu0 0.0
        %1313 = vmatprep.subr.mxu0 0.0
        %1314 = vmatpush1.xpose.msra.mxu0 %v1287
        %1315 = vmatprep.subr.mxu0 0.0
        %1316 = vmatpush1.xpose.msra.mxu0 %v1284
        %1317 = vmatprep.subr.mxu0 0.0
        %1318 = vmatpush1.xpose.msra.mxu0 %v1281
        %1319 = vmatprep.subr.mxu0 0.0
        %1320 = vmatpush1.xpose.msra.mxu0 %v1278
        %1321 = vmatprep.subr.mxu0 0.0
        %1322 = vmatpush2.xpose.msra.mxu0 0.0
        %1323 = vmatprep.subr.mxu0 0.0
        %1324 = vmatpush2.xpose.msra.mxu0 0.0
        %1325 = vmatprep.subr.mxu0 0.0
        %1326 = vmatpush2.xpose.msra.mxu0 0.0
        %1327 = vmatprep.subr.mxu0 0.0
        %1328 = vmatpush2.xpose.msra.mxu0 0.0
        %1329 = vmatprep.subr.mxu0 0.0
        %1330 = vmatpush2.xpose.msra.mxu0 0.0
        %1331 = vmatprep.subr.mxu0 0.0
        %1332 = vmatpush2.xpose.msra.mxu0 0.0
        %1333 = vmatprep.subr.mxu0 0.0
        %1334 = vmatpush2.xpose.msra.mxu0 0.0
        %1335 = vmatprep.subr.mxu0 0.0
        %1336 = vmatpush2.xpose.msra.mxu0 0.0
        %1337 = vmatprep.subr.mxu0 0.0
        %1338 = vmatpush2.xpose.msra.mxu0 0.0
        %1339 = vmatprep.subr.mxu0 0.0
        %1340 = vmatpush2.xpose.msra.mxu0 0.0
        %1341 = vmatprep.subr.mxu0 0.0
        %1342 = vmatpush2.xpose.msra.mxu0 0.0
        %1343 = vmatprep.subr.mxu0 0.0
        %1344 = vmatpush2.xpose.msra.mxu0 0.0
        %1345 = vmatprep.subr.mxu0 0.0
        %1346 = vmatpush2.xpose.msra.mxu0 0.0
        %1347 = vmatprep.subr.mxu0 0.0
        %1348 = vmatpush2.xpose.msra.mxu0 0.0
        %1349 = vmatprep.subr.mxu0 0.0
        %1350 = vmatpush2.xpose.msra.mxu0 0.0
        %1351 = vmatprep.subr.mxu0 0.0
        %1352 = vmatpush2.xpose.msra.mxu0 0.0
        %1353 = vmatprep.mubr.f32.mxu0 0.0
        %1354 = vmatmul.mubr.f32.gmra.mxu0 %v1275
        %v1355 = vpop.f32.mrf.mxu0
        %v1356 = vadd.f32 0.0, %v1355
        %v1357 = vpop.f32.mrf.mxu0
        %1358 = vdwg.mxu0
        %1359 = vst.msk [vmem:[%s302] sm:$0xff] %vm1273, %v1356
        %s1360 = sand.u32 %s198, 1
        %s1361 = scalar_lea.sflag [#allocation5], %s1360
        %s1362 = sand.u32 %s198, 1
        %s1363 = smul.addr %s1362, 8
        %s1364 = scalar_lea.vmem [#allocation4], %s1363
        // Predicated region
        $region49: #{tpu_custom_call.1} parent=47 // pred_check
          %p1365 = pneg %p208
        $region50: #{tpu_custom_call.1} parent=47 // pred_check_branch
          %1367 = sbr.rel (%p1365) target = $region52
        $region51: #{tpu_custom_call.1} parent=47 // pred_region
          %s1369 = ssub.s32 128, 128
          %1370 = vsyncadd %s1361, %s1369
          %s1371 = smul.addr %s28, 128
          %s1372 = scalar_lea.hbm %s8, %s1371
          %s1374 = sshll.u32 %s1364, 4
          %s1375 = int_to_ptr.vmem [resolvable:$true] %s1374
          %1377 = dma.vmem_to_hbm [thread:$0]  %s1375, 128, %s1372, %s1361
        $region52: #{tpu_custom_call.1} parent=47 // pred_fallthru
          _
      $region48: #{tpu_custom_call.1} parent=5 // pred_fallthru
        _
      %p1378 = scmp.le.s32.totalorder 2, %s23
      // Predicated region
      $region53: #{tpu_custom_call.1} parent=5 // pred_check
        %p1379 = pneg %p1378
      $region54: #{tpu_custom_call.1} parent=5 // pred_check_branch
        %1381 = sbr.rel (%p1379) target = $region56
      $region55: #{tpu_custom_call.1} parent=5 // pred_region
        %s1382 = ssub.s32 %s23, 2
        // Predicated region
        $region57: #{tpu_custom_call.1} parent=55 // pred_check
          %p1383 = pneg %p214
        $region58: #{tpu_custom_call.1} parent=55 // pred_check_branch
          %1385 = sbr.rel (%p1383) target = $region60
        $region59: #{tpu_custom_call.1} parent=55 // pred_region
          %s1386 = sand.u32 %s199, 1
          %s1387 = scalar_lea.sflag [#allocation5], %s1386
          %s1388 = sand.u32 %s199, 1
          %s1389 = smul.addr %s1388, 8
          %s1390 = scalar_lea.vmem [#allocation4], %s1389
          %1391 = dma.done %s1387, 128
        $region60: #{tpu_custom_call.1} parent=55 // pred_fallthru
          _
      $region56: #{tpu_custom_call.1} parent=5 // pred_fallthru
        _
    $region6: #{tpu_custom_call.1} parent=1 // loop_footer
      %s27 = sadd.s32 1, %s23
    $region7: #{tpu_custom_call.1} parent=1 // loop_footer_branch
      %22 = sbr.rel target = $region3
    $region8: #{tpu_custom_call.1} parent=1 // loop_exit
      _
    %1392 = vsyncpa [#allocation5], 1
    %s1393 = scalar_lea.sflag [#allocation5], 1
    %1394 = vsyncpa %s1393, 1

</llo_original>
